<compile_context>
chip_gen: v7x
topology: tpu7x:2x2x1
jax: 0.10.0
libtpu: 0.0.40
codegen_flags: <defaults>
</compile_context>

<pallas_src>
import functools
import math

import jax
import jax.numpy as jnp
import numpy as np
from jax import lax
from jax.experimental import pallas as pl
from jax.experimental.pallas import tpu as pltpu

_SQRT_HALF = 1.0 / math.sqrt(2.0)


def _gelu_exact(x):
    # PyTorch nn.GELU / F.gelu default = exact erf formulation.
    return 0.5 * x * (1.0 + lax.erf(x * _SQRT_HALF))


def _double_conv_kernel(xp_ref, w1_ref, g1_ref, b1_ref, w2_ref, g2_ref, b2_ref,
                        mlo_ref, mhi_ref, out_ref,
                        p1_ref, h1p_ref, p2_ref,
                        *, H, W, Cin, Cmid, Cout, residual, eps):
    S = H * W
    pad = W + 1                      # flat zero-pad on each side of the H*W axis

    m_lo = mlo_ref[...]              # (1, S): 0 where x == 0     (kx == 0 taps)
    m_hi = mhi_ref[...]              # (1, S): 0 where x == W - 1 (kx == 2 taps)

    # ---- conv1: build im2col scratch (9*Cin, S), then a single MXU matmul ----
    x_center = None
    for k in range(9):
        ky, kx = divmod(k, 3)
        start = ky * W + kx                           # lane offset of this tap's window
        tap = xp_ref[0, :, start:start + S]           # (Cin, S), input dtype
        if kx == 0:
            tap = tap * m_lo
        elif kx == 2:
            tap = tap * m_hi
        elif k == 4:
            x_center = tap                            # untouched input, reused by residual
        p1_ref[k * Cin:(k + 1) * Cin, :] = tap

    a1 = jnp.dot(w1_ref[...], p1_ref[...],
                 preferred_element_type=jnp.float32)              # (Cmid, S), f32 accum

    # ---- GroupNorm(1, Cmid): single-pass stats over the whole (Cmid, H*W) slab ----
    mean1 = jnp.mean(a1)
    var1 = jnp.mean(a1 * a1) - mean1 * mean1
    h1 = (a1 - mean1) * lax.rsqrt(var1 + eps)
    h1 = h1 * g1_ref[...] + b1_ref[...]                           # affine params are f32
    h1 = _gelu_exact(h1)                                          # (Cmid, S), lane-dense
    h1_dt = h1.astype(h1p_ref.dtype)

    # ---- stage mid activations into the flat zero-padded scratch for conv2 ----
    # Only the two (Cmid, pad) end strips need zeroing; the interior is fully
    # overwritten each step.  (Not gated on program_id == 0: scratch is per-core.)
    zstrip = jnp.zeros((Cmid, pad), dtype=h1p_ref.dtype)
    h1p_ref[:, 0:pad] = zstrip
    h1p_ref[:, pad + S:pad + S + pad] = zstrip
    h1p_ref[:, pad:pad + S] = h1_dt

    # ---- conv2: same im2col + single matmul ----
    for k in range(9):
        ky, kx = divmod(k, 3)
        start = ky * W + kx
        if k == 4:
            tap = h1_dt                                # center tap: skip VMEM round trip
        else:
            tap = h1p_ref[:, start:start + S]          # (Cmid, S)
            if kx == 0:
                tap = tap * m_lo
            elif kx == 2:
                tap = tap * m_hi
        p2_ref[k * Cmid:(k + 1) * Cmid, :] = tap

    a2 = jnp.dot(w2_ref[...], p2_ref[...],
                 preferred_element_type=jnp.float32)              # (Cout, S), f32 accum

    # ---- GroupNorm(1, Cout), single-pass stats ----
    mean2 = jnp.mean(a2)
    var2 = jnp.mean(a2 * a2) - mean2 * mean2
    y = (a2 - mean2) * lax.rsqrt(var2 + eps)
    y = y * g2_ref[...] + b2_ref[...]

    if residual:
        # requires Cin == Cout; x_center is the already-loaded untouched input.
        y = _gelu_exact(y + x_center.astype(jnp.float32))

    out_ref[0] = y.astype(out_ref.dtype)                          # lane-dense (Cout, H*W)


def double_conv_pallas(x_nchw, w1_oihw, g1, b1, w2_oihw, g2, b2,
                       *, residual=False, eps=1e-5):
    N, Cin, H, W = x_nchw.shape
    Cmid = w1_oihw.shape[0]
    Cout = w2_oihw.shape[0]
    if residual:
        assert Cin == Cout, "residual path needs in_channels == out_channels"
    S = H * W
    pad = W + 1
    dt = x_nchw.dtype

    # glue (plain XLA, no transposes on the data path):
    #   NCHW -> (N, C, H*W) is a free reshape; zero-pad the flat spatial axis by W+1
    #   on each side so every 3x3 tap is a plain lane-offset window inside the kernel.
    x_cs = x_nchw.reshape(N, Cin, S)
    xp = jnp.pad(x_cs, ((0, 0), (0, 0), (pad, pad)))

    # weights OIHW -> (C_out, 9*C_in) with column order (tap, in-channel),
    # matching the im2col row order built in-kernel.  Keep the input dtype for the MXU.
    w1t = jnp.transpose(w1_oihw, (0, 2, 3, 1)).reshape(Cmid, 9 * Cin).astype(dt)
    w2t = jnp.transpose(w2_oihw, (0, 2, 3, 1)).reshape(Cout, 9 * Cmid).astype(dt)

    # GroupNorm affine params as (C, 1) f32 for lane-broadcast in the (C, H*W) layout.
    g1r = g1.reshape(Cmid, 1).astype(jnp.float32)
    b1r = b1.reshape(Cmid, 1).astype(jnp.float32)
    g2r = g2.reshape(Cout, 1).astype(jnp.float32)
    b2r = b2.reshape(Cout, 1).astype(jnp.float32)

    # masks killing the row-wrap lanes for the left/right taps (precomputed once).
    col = jnp.arange(S, dtype=jnp.int32) % W
    m_lo = (col != 0).astype(dt).reshape(1, S)        # valid lanes for kx == 0 taps
    m_hi = (col != W - 1).astype(dt).reshape(1, S)    # valid lanes for kx == 2 taps

    kernel = functools.partial(_double_conv_kernel, H=H, W=W, Cin=Cin, Cmid=Cmid,
                               Cout=Cout, residual=residual, eps=eps)

    itemsize = jnp.dtype(dt).itemsize
    cost = pl.CostEstimate(
        flops=2 * N * S * (Cmid * 9 * Cin + Cout * 9 * Cmid),
        transcendentals=N * S * (Cmid + (Cout if residual else 0)),
        bytes_accessed=(xp.size + w1t.size + w2t.size + 2 * S + N * Cout * S) * itemsize
                       + 4 * (2 * Cmid + 2 * Cout),
    )

    out_cs = pl.pallas_call(
        kernel,
        out_shape=jax.ShapeDtypeStruct((N, Cout, S), dt),
        grid_spec=pltpu.PrefetchScalarGridSpec(
            num_scalar_prefetch=0,
            grid=(N,),
            in_specs=[
                pl.BlockSpec((1, Cin, S + 2 * pad), lambda b: (b, 0, 0)),
                pl.BlockSpec((Cmid, 9 * Cin), lambda b: (0, 0)),
                pl.BlockSpec((Cmid, 1), lambda b: (0, 0)),
                pl.BlockSpec((Cmid, 1), lambda b: (0, 0)),
                pl.BlockSpec((Cout, 9 * Cmid), lambda b: (0, 0)),
                pl.BlockSpec((Cout, 1), lambda b: (0, 0)),
                pl.BlockSpec((Cout, 1), lambda b: (0, 0)),
                pl.BlockSpec((1, S), lambda b: (0, 0)),
                pl.BlockSpec((1, S), lambda b: (0, 0)),
            ],
            out_specs=pl.BlockSpec((1, Cout, S), lambda b: (b, 0, 0)),
            scratch_shapes=[
                pltpu.VMEM((9 * Cin, S), dt),            # im2col for conv1
                pltpu.VMEM((Cmid, S + 2 * pad), dt),     # flat zero-padded mid acts
                pltpu.VMEM((9 * Cmid, S), dt),           # im2col for conv2
            ],
        ),
        compiler_params=pltpu.CompilerParams(dimension_semantics=("parallel",)),
        cost_estimate=cost,
    )(xp, w1t, g1r, b1r, w2t, g2r, b2r, m_lo, m_hi)

    # (N, Cout, H*W) -> NCHW is a free reshape: no output transpose pass.
    return out_cs.reshape(N, Cout, H, W)


def double_conv_ref(x, w1, g1, b1, w2, g2, b2, *, residual, eps=1e-5):
    """Pure-JAX reference (matches PyTorch semantics)."""
    def conv(inp, w):
        return lax.conv_general_dilated(inp, w, (1, 1), ((1, 1), (1, 1)),
                                        dimension_numbers=('NCHW', 'OIHW', 'NCHW'))

    def gn1(inp, g, b):  # GroupNorm(num_groups=1), biased variance
        mean = jnp.mean(inp, axis=(1, 2, 3), keepdims=True)
        var = jnp.mean((inp - mean) ** 2, axis=(1, 2, 3), keepdims=True)
        z = (inp - mean) / jnp.sqrt(var + eps)
        return z * g[None, :, None, None] + b[None, :, None, None]

    h = jax.nn.gelu(gn1(conv(x, w1), g1, b1), approximate=False)
    y = gn1(conv(h, w2), g2, b2)
    if residual:
        y = jax.nn.gelu(x + y, approximate=False)
    return y


if __name__ == "__main__":
    key = jax.random.PRNGKey(0)
    N, Cin, H, W = 2, 4, 16, 16
    Cmid, Cout = 8, 4
    residual = True   # exercise the residual branch (in == out channels)

    k = jax.random.split(key, 7)
    x = jax.random.normal(k[0], (N, Cin, H, W), jnp.float32)
    w1 = jax.random.normal(k[1], (Cmid, Cin, 3, 3), jnp.float32) * 0.1   # Conv2d OIHW, bias=False
    g1 = 1.0 + 0.1 * jax.random.normal(k[2], (Cmid,), jnp.float32)       # GroupNorm affine
    b1 = 0.1 * jax.random.normal(k[3], (Cmid,), jnp.float32)
    w2 = jax.random.normal(k[4], (Cout, Cmid, 3, 3), jnp.float32) * 0.1
    g2 = 1.0 + 0.1 * jax.random.normal(k[5], (Cout,), jnp.float32)
    b2 = 0.1 * jax.random.normal(k[6], (Cout,), jnp.float32)

    out = double_conv_pallas(x, w1, g1, b1, w2, g2, b2, residual=residual)
    out = jax.block_until_ready(out)

    ref = double_conv_ref(x, w1, g1, b1, w2, g2, b2, residual=residual)
    np.testing.assert_allclose(np.asarray(out), np.asarray(ref), rtol=1e-4, atol=2e-4)

    print("KERNEL_OK")
</pallas_src>

<mosaic_0001>
module attributes {stable_mosaic.version = 11 : i64} {
  func.func @_double_conv_kernel(%arg0: i32, %arg1: memref<1x4x290xf32, #tpu.memory_space<vmem>>, %arg2: memref<8x36xf32, #tpu.memory_space<vmem>>, %arg3: memref<8x1xf32, #tpu.memory_space<vmem>>, %arg4: memref<8x1xf32, #tpu.memory_space<vmem>>, %arg5: memref<4x72xf32, #tpu.memory_space<vmem>>, %arg6: memref<4x1xf32, #tpu.memory_space<vmem>>, %arg7: memref<4x1xf32, #tpu.memory_space<vmem>>, %arg8: memref<1x256xf32, #tpu.memory_space<vmem>>, %arg9: memref<1x256xf32, #tpu.memory_space<vmem>>, %arg10: memref<1x4x256xf32, #tpu.memory_space<vmem>>, %arg11: memref<36x256xf32, #tpu.memory_space<vmem>>, %arg12: memref<8x290xf32, #tpu.memory_space<vmem>>, %arg13: memref<72x256xf32, #tpu.memory_space<vmem>>) attributes {dimension_semantics = [#tpu.dimension_semantics<parallel>], iteration_bounds = array<i64: 2>, scalar_prefetch = 0 : i64, scratch_operands = 3 : i64, tpu.core_type = #tpu.core_type<tc>, window_params = [{transform_indices = @transform_0, window_bounds = array<i64: 1, 4, 290>}, {pipeline_mode = #tpu.pipeline_mode<synchronous>, transform_indices = @transform_1, window_bounds = array<i64: 8, 36>}, {pipeline_mode = #tpu.pipeline_mode<synchronous>, transform_indices = @transform_2, window_bounds = array<i64: 8, 1>}, {pipeline_mode = #tpu.pipeline_mode<synchronous>, transform_indices = @transform_3, window_bounds = array<i64: 8, 1>}, {pipeline_mode = #tpu.pipeline_mode<synchronous>, transform_indices = @transform_4, window_bounds = array<i64: 4, 72>}, {pipeline_mode = #tpu.pipeline_mode<synchronous>, transform_indices = @transform_5, window_bounds = array<i64: 4, 1>}, {pipeline_mode = #tpu.pipeline_mode<synchronous>, transform_indices = @transform_6, window_bounds = array<i64: 4, 1>}, {pipeline_mode = #tpu.pipeline_mode<synchronous>, transform_indices = @transform_7, window_bounds = array<i64: 1, 256>}, {pipeline_mode = #tpu.pipeline_mode<synchronous>, transform_indices = @transform_8, window_bounds = array<i64: 1, 256>}, {transform_indices = @transform_9, window_bounds = array<i64: 1, 4, 256>}]} {
    %c0 = arith.constant 0 : index
    %c0_0 = arith.constant 0 : index
    %0 = vector.load %arg8[%c0, %c0_0] : memref<1x256xf32, #tpu.memory_space<vmem>>, vector<1x256xf32>
    %c0_1 = arith.constant 0 : index
    %c0_2 = arith.constant 0 : index
    %1 = vector.load %arg9[%c0_1, %c0_2] : memref<1x256xf32, #tpu.memory_space<vmem>>, vector<1x256xf32>
    %c0_3 = arith.constant 0 : index
    %c0_4 = arith.constant 0 : index
    %c0_5 = arith.constant 0 : index
    %2 = vector.load %arg1[%c0_3, %c0_4, %c0_5] : memref<1x4x290xf32, #tpu.memory_space<vmem>>, vector<1x4x256xf32>
    %3 = vector.shape_cast %2 : vector<1x4x256xf32> to vector<4x256xf32>
    %4 = vector.broadcast %0 : vector<1x256xf32> to vector<4x256xf32>
    %5 = arith.mulf %3, %4 : vector<4x256xf32>
    %c0_6 = arith.constant 0 : index
    %c0_7 = arith.constant 0 : index
    %6 = vector.load %arg11[%c0_6, %c0_7] : memref<36x256xf32, #tpu.memory_space<vmem>>, vector<4x256xf32>
    tpu.vector_store %arg11[%c0_6, %c0_7], %5 {strides = array<i32>} : memref<36x256xf32, #tpu.memory_space<vmem>>, vector<4x256xf32>,
    %c0_8 = arith.constant 0 : index
    %c0_9 = arith.constant 0 : index
    %c1 = arith.constant 1 : index
    %7 = vector.load %arg1[%c0_8, %c0_9, %c1] : memref<1x4x290xf32, #tpu.memory_space<vmem>>, vector<1x4x256xf32>
    %8 = vector.shape_cast %7 : vector<1x4x256xf32> to vector<4x256xf32>
    %c4 = arith.constant 4 : index
    %c0_10 = arith.constant 0 : index
    %9 = vector.load %arg11[%c4, %c0_10] : memref<36x256xf32, #tpu.memory_space<vmem>>, vector<4x256xf32>
    tpu.vector_store %arg11[%c4, %c0_10], %8 {strides = array<i32>} : memref<36x256xf32, #tpu.memory_space<vmem>>, vector<4x256xf32>,
    %c0_11 = arith.constant 0 : index
    %c0_12 = arith.constant 0 : index
    %c2 = arith.constant 2 : index
    %10 = vector.load %arg1[%c0_11, %c0_12, %c2] : memref<1x4x290xf32, #tpu.memory_space<vmem>>, vector<1x4x256xf32>
    %11 = vector.shape_cast %10 : vector<1x4x256xf32> to vector<4x256xf32>
    %12 = vector.broadcast %1 : vector<1x256xf32> to vector<4x256xf32>
    %13 = arith.mulf %11, %12 : vector<4x256xf32>
    %c8 = arith.constant 8 : index
    %c0_13 = arith.constant 0 : index
    %14 = vector.load %arg11[%c8, %c0_13] : memref<36x256xf32, #tpu.memory_space<vmem>>, vector<4x256xf32>
    tpu.vector_store %arg11[%c8, %c0_13], %13 {strides = array<i32>} : memref<36x256xf32, #tpu.memory_space<vmem>>, vector<4x256xf32>,
    %c0_14 = arith.constant 0 : index
    %c0_15 = arith.constant 0 : index
    %c16 = arith.constant 16 : index
    %15 = vector.load %arg1[%c0_14, %c0_15, %c16] : memref<1x4x290xf32, #tpu.memory_space<vmem>>, vector<1x4x256xf32>
    %16 = vector.shape_cast %15 : vector<1x4x256xf32> to vector<4x256xf32>
    %17 = vector.broadcast %0 : vector<1x256xf32> to vector<4x256xf32>
    %18 = arith.mulf %16, %17 : vector<4x256xf32>
    %c12 = arith.constant 12 : index
    %c0_16 = arith.constant 0 : index
    %19 = vector.load %arg11[%c12, %c0_16] : memref<36x256xf32, #tpu.memory_space<vmem>>, vector<4x256xf32>
    tpu.vector_store %arg11[%c12, %c0_16], %18 {strides = array<i32>} : memref<36x256xf32, #tpu.memory_space<vmem>>, vector<4x256xf32>,
    %c0_17 = arith.constant 0 : index
    %c0_18 = arith.constant 0 : index
    %c17 = arith.constant 17 : index
    %20 = vector.load %arg1[%c0_17, %c0_18, %c17] : memref<1x4x290xf32, #tpu.memory_space<vmem>>, vector<1x4x256xf32>
    %21 = vector.shape_cast %20 : vector<1x4x256xf32> to vector<4x256xf32>
    %c16_19 = arith.constant 16 : index
    %c0_20 = arith.constant 0 : index
    %22 = vector.load %arg11[%c16_19, %c0_20] : memref<36x256xf32, #tpu.memory_space<vmem>>, vector<4x256xf32>
    tpu.vector_store %arg11[%c16_19, %c0_20], %21 {strides = array<i32>} : memref<36x256xf32, #tpu.memory_space<vmem>>, vector<4x256xf32>,
    %c0_21 = arith.constant 0 : index
    %c0_22 = arith.constant 0 : index
    %c18 = arith.constant 18 : index
    %23 = vector.load %arg1[%c0_21, %c0_22, %c18] : memref<1x4x290xf32, #tpu.memory_space<vmem>>, vector<1x4x256xf32>
    %24 = vector.shape_cast %23 : vector<1x4x256xf32> to vector<4x256xf32>
    %25 = vector.broadcast %1 : vector<1x256xf32> to vector<4x256xf32>
    %26 = arith.mulf %24, %25 : vector<4x256xf32>
    %c20 = arith.constant 20 : index
    %c0_23 = arith.constant 0 : index
    %27 = vector.load %arg11[%c20, %c0_23] : memref<36x256xf32, #tpu.memory_space<vmem>>, vector<4x256xf32>
    tpu.vector_store %arg11[%c20, %c0_23], %26 {strides = array<i32>} : memref<36x256xf32, #tpu.memory_space<vmem>>, vector<4x256xf32>,
    %c0_24 = arith.constant 0 : index
    %c0_25 = arith.constant 0 : index
    %c32 = arith.constant 32 : index
    %28 = vector.load %arg1[%c0_24, %c0_25, %c32] : memref<1x4x290xf32, #tpu.memory_space<vmem>>, vector<1x4x256xf32>
    %29 = vector.shape_cast %28 : vector<1x4x256xf32> to vector<4x256xf32>
    %30 = vector.broadcast %0 : vector<1x256xf32> to vector<4x256xf32>
    %31 = arith.mulf %29, %30 : vector<4x256xf32>
    %c24 = arith.constant 24 : index
    %c0_26 = arith.constant 0 : index
    %32 = vector.load %arg11[%c24, %c0_26] : memref<36x256xf32, #tpu.memory_space<vmem>>, vector<4x256xf32>
    tpu.vector_store %arg11[%c24, %c0_26], %31 {strides = array<i32>} : memref<36x256xf32, #tpu.memory_space<vmem>>, vector<4x256xf32>,
    %c0_27 = arith.constant 0 : index
    %c0_28 = arith.constant 0 : index
    %c33 = arith.constant 33 : index
    %33 = vector.load %arg1[%c0_27, %c0_28, %c33] : memref<1x4x290xf32, #tpu.memory_space<vmem>>, vector<1x4x256xf32>
    %34 = vector.shape_cast %33 : vector<1x4x256xf32> to vector<4x256xf32>
    %c28 = arith.constant 28 : index
    %c0_29 = arith.constant 0 : index
    %35 = vector.load %arg11[%c28, %c0_29] : memref<36x256xf32, #tpu.memory_space<vmem>>, vector<4x256xf32>
    tpu.vector_store %arg11[%c28, %c0_29], %34 {strides = array<i32>} : memref<36x256xf32, #tpu.memory_space<vmem>>, vector<4x256xf32>,
    %c0_30 = arith.constant 0 : index
    %c0_31 = arith.constant 0 : index
    %c34 = arith.constant 34 : index
    %36 = vector.load %arg1[%c0_30, %c0_31, %c34] : memref<1x4x290xf32, #tpu.memory_space<vmem>>, vector<1x4x256xf32>
    %37 = vector.shape_cast %36 : vector<1x4x256xf32> to vector<4x256xf32>
    %38 = vector.broadcast %1 : vector<1x256xf32> to vector<4x256xf32>
    %39 = arith.mulf %37, %38 : vector<4x256xf32>
    %c32_32 = arith.constant 32 : index
    %c0_33 = arith.constant 0 : index
    %40 = vector.load %arg11[%c32_32, %c0_33] : memref<36x256xf32, #tpu.memory_space<vmem>>, vector<4x256xf32>
    tpu.vector_store %arg11[%c32_32, %c0_33], %39 {strides = array<i32>} : memref<36x256xf32, #tpu.memory_space<vmem>>, vector<4x256xf32>,
    %c0_34 = arith.constant 0 : index
    %c0_35 = arith.constant 0 : index
    %41 = vector.load %arg2[%c0_34, %c0_35] : memref<8x36xf32, #tpu.memory_space<vmem>>, vector<8x36xf32>
    %c0_36 = arith.constant 0 : index
    %c0_37 = arith.constant 0 : index
    %42 = vector.load %arg11[%c0_36, %c0_37] : memref<36x256xf32, #tpu.memory_space<vmem>>, vector<36x256xf32>
    %cst = arith.constant dense<0.000000e+00> : vector<8x256xf32>
    %43 = tpu.matmul %41, %42, %cst {dimension_numbers = #tpu.dot_dimension_numbers<[1], [0], [0], [1], [0, 0, 1, 1], [], []>} : vector<8x36xf32>, vector<36x256xf32>, vector<8x256xf32> -> vector<8x256xf32>
    %44 = vector.shape_cast %43 : vector<8x256xf32> to vector<1x8x256xf32>
    %cst_38 = arith.constant dense<0.000000e+00> : vector<1xf32>
    %45 = vector.multi_reduction <add>, %44, %cst_38 [1, 2] : vector<1x8x256xf32> to vector<1xf32>
    %46 = vector.shape_cast %45 : vector<1xf32> to vector<1x1x1xf32>
    %47 = vector.extract %46[0, 0, 0] : f32 from vector<1x1x1xf32>
    %cst_39 = arith.constant 2.048000e+03 : f32
    %48 = arith.divf %47, %cst_39 : f32
    %49 = arith.mulf %43, %43 : vector<8x256xf32>
    %50 = vector.shape_cast %49 : vector<8x256xf32> to vector<1x8x256xf32>
    %cst_40 = arith.constant dense<0.000000e+00> : vector<1xf32>
    %51 = vector.multi_reduction <add>, %50, %cst_40 [1, 2] : vector<1x8x256xf32> to vector<1xf32>
    %52 = vector.shape_cast %51 : vector<1xf32> to vector<1x1x1xf32>
    %53 = vector.extract %52[0, 0, 0] : f32 from vector<1x1x1xf32>
    %cst_41 = arith.constant 2.048000e+03 : f32
    %54 = arith.divf %53, %cst_41 : f32
    %55 = arith.mulf %48, %48 : f32
    %56 = arith.subf %54, %55 : f32
    %57 = vector.broadcast %48 : f32 to vector<8x256xf32>
    %58 = arith.subf %43, %57 : vector<8x256xf32>
    %cst_42 = arith.constant 9.99999974E-6 : f32
    %59 = arith.addf %56, %cst_42 : f32
    %60 = math.rsqrt %59 : f32
    %61 = vector.broadcast %60 : f32 to vector<8x256xf32>
    %62 = arith.mulf %58, %61 : vector<8x256xf32>
    %c0_43 = arith.constant 0 : index
    %c0_44 = arith.constant 0 : index
    %63 = vector.load %arg3[%c0_43, %c0_44] : memref<8x1xf32, #tpu.memory_space<vmem>>, vector<8x1xf32>
    %64 = vector.broadcast %63 : vector<8x1xf32> to vector<8x256xf32>
    %65 = arith.mulf %62, %64 : vector<8x256xf32>
    %c0_45 = arith.constant 0 : index
    %c0_46 = arith.constant 0 : index
    %66 = vector.load %arg4[%c0_45, %c0_46] : memref<8x1xf32, #tpu.memory_space<vmem>>, vector<8x1xf32>
    %67 = vector.broadcast %66 : vector<8x1xf32> to vector<8x256xf32>
    %68 = arith.addf %65, %67 : vector<8x256xf32>
    %cst_47 = arith.constant 5.000000e-01 : f32
    %69 = vector.broadcast %cst_47 : f32 to vector<8x256xf32>
    %70 = arith.mulf %69, %68 : vector<8x256xf32>
    %cst_48 = arith.constant 0.707106769 : f32
    %71 = vector.broadcast %cst_48 : f32 to vector<8x256xf32>
    %72 = arith.mulf %68, %71 : vector<8x256xf32>
    %73 = math.erf %72 : vector<8x256xf32>
    %cst_49 = arith.constant 1.000000e+00 : f32
    %74 = vector.broadcast %cst_49 : f32 to vector<8x256xf32>
    %75 = arith.addf %74, %73 : vector<8x256xf32>
    %76 = arith.mulf %70, %75 : vector<8x256xf32>
    %cst_50 = arith.constant 0.000000e+00 : f32
    %77 = vector.broadcast %cst_50 : f32 to vector<8x17xf32>
    %c0_51 = arith.constant 0 : index
    %c0_52 = arith.constant 0 : index
    %78 = vector.load %arg12[%c0_51, %c0_52] : memref<8x290xf32, #tpu.memory_space<vmem>>, vector<8x17xf32>
    tpu.vector_store %arg12[%c0_51, %c0_52], %77 {strides = array<i32>} : memref<8x290xf32, #tpu.memory_space<vmem>>, vector<8x17xf32>,
    %c0_53 = arith.constant 0 : index
    %c273 = arith.constant 273 : index
    %79 = vector.load %arg12[%c0_53, %c273] : memref<8x290xf32, #tpu.memory_space<vmem>>, vector<8x17xf32>
    tpu.vector_store %arg12[%c0_53, %c273], %77 {strides = array<i32>} : memref<8x290xf32, #tpu.memory_space<vmem>>, vector<8x17xf32>,
    %c0_54 = arith.constant 0 : index
    %c17_55 = arith.constant 17 : index
    %80 = vector.load %arg12[%c0_54, %c17_55] : memref<8x290xf32, #tpu.memory_space<vmem>>, vector<8x256xf32>
    tpu.vector_store %arg12[%c0_54, %c17_55], %76 {strides = array<i32>} : memref<8x290xf32, #tpu.memory_space<vmem>>, vector<8x256xf32>,
    %c0_56 = arith.constant 0 : index
    %c0_57 = arith.constant 0 : index
    %81 = vector.load %arg12[%c0_56, %c0_57] : memref<8x290xf32, #tpu.memory_space<vmem>>, vector<8x256xf32>
    %82 = vector.broadcast %0 : vector<1x256xf32> to vector<8x256xf32>
    %83 = arith.mulf %81, %82 : vector<8x256xf32>
    %c0_58 = arith.constant 0 : index
    %c0_59 = arith.constant 0 : index
    %84 = vector.load %arg13[%c0_58, %c0_59] : memref<72x256xf32, #tpu.memory_space<vmem>>, vector<8x256xf32>
    tpu.vector_store %arg13[%c0_58, %c0_59], %83 {strides = array<i32>} : memref<72x256xf32, #tpu.memory_space<vmem>>, vector<8x256xf32>,
    %c0_60 = arith.constant 0 : index
    %c1_61 = arith.constant 1 : index
    %85 = vector.load %arg12[%c0_60, %c1_61] : memref<8x290xf32, #tpu.memory_space<vmem>>, vector<8x256xf32>
    %c8_62 = arith.constant 8 : index
    %c0_63 = arith.constant 0 : index
    %86 = vector.load %arg13[%c8_62, %c0_63] : memref<72x256xf32, #tpu.memory_space<vmem>>, vector<8x256xf32>
    tpu.vector_store %arg13[%c8_62, %c0_63], %85 {strides = array<i32>} : memref<72x256xf32, #tpu.memory_space<vmem>>, vector<8x256xf32>,
    %c0_64 = arith.constant 0 : index
    %c2_65 = arith.constant 2 : index
    %87 = vector.load %arg12[%c0_64, %c2_65] : memref<8x290xf32, #tpu.memory_space<vmem>>, vector<8x256xf32>
    %88 = vector.broadcast %1 : vector<1x256xf32> to vector<8x256xf32>
    %89 = arith.mulf %87, %88 : vector<8x256xf32>
    %c16_66 = arith.constant 16 : index
    %c0_67 = arith.constant 0 : index
    %90 = vector.load %arg13[%c16_66, %c0_67] : memref<72x256xf32, #tpu.memory_space<vmem>>, vector<8x256xf32>
    tpu.vector_store %arg13[%c16_66, %c0_67], %89 {strides = array<i32>} : memref<72x256xf32, #tpu.memory_space<vmem>>, vector<8x256xf32>,
    %c0_68 = arith.constant 0 : index
    %c16_69 = arith.constant 16 : index
    %91 = vector.load %arg12[%c0_68, %c16_69] : memref<8x290xf32, #tpu.memory_space<vmem>>, vector<8x256xf32>
    %92 = vector.broadcast %0 : vector<1x256xf32> to vector<8x256xf32>
    %93 = arith.mulf %91, %92 : vector<8x256xf32>
    %c24_70 = arith.constant 24 : index
    %c0_71 = arith.constant 0 : index
    %94 = vector.load %arg13[%c24_70, %c0_71] : memref<72x256xf32, #tpu.memory_space<vmem>>, vector<8x256xf32>
    tpu.vector_store %arg13[%c24_70, %c0_71], %93 {strides = array<i32>} : memref<72x256xf32, #tpu.memory_space<vmem>>, vector<8x256xf32>,
    %c32_72 = arith.constant 32 : index
    %c0_73 = arith.constant 0 : index
    %95 = vector.load %arg13[%c32_72, %c0_73] : memref<72x256xf32, #tpu.memory_space<vmem>>, vector<8x256xf32>
    tpu.vector_store %arg13[%c32_72, %c0_73], %76 {strides = array<i32>} : memref<72x256xf32, #tpu.memory_space<vmem>>, vector<8x256xf32>,
    %c0_74 = arith.constant 0 : index
    %c18_75 = arith.constant 18 : index
    %96 = vector.load %arg12[%c0_74, %c18_75] : memref<8x290xf32, #tpu.memory_space<vmem>>, vector<8x256xf32>
    %97 = vector.broadcast %1 : vector<1x256xf32> to vector<8x256xf32>
    %98 = arith.mulf %96, %97 : vector<8x256xf32>
    %c40 = arith.constant 40 : index
    %c0_76 = arith.constant 0 : index
    %99 = vector.load %arg13[%c40, %c0_76] : memref<72x256xf32, #tpu.memory_space<vmem>>, vector<8x256xf32>
    tpu.vector_store %arg13[%c40, %c0_76], %98 {strides = array<i32>} : memref<72x256xf32, #tpu.memory_space<vmem>>, vector<8x256xf32>,
    %c0_77 = arith.constant 0 : index
    %c32_78 = arith.constant 32 : index
    %100 = vector.load %arg12[%c0_77, %c32_78] : memref<8x290xf32, #tpu.memory_space<vmem>>, vector<8x256xf32>
    %101 = vector.broadcast %0 : vector<1x256xf32> to vector<8x256xf32>
    %102 = arith.mulf %100, %101 : vector<8x256xf32>
    %c48 = arith.constant 48 : index
    %c0_79 = arith.constant 0 : index
    %103 = vector.load %arg13[%c48, %c0_79] : memref<72x256xf32, #tpu.memory_space<vmem>>, vector<8x256xf32>
    tpu.vector_store %arg13[%c48, %c0_79], %102 {strides = array<i32>} : memref<72x256xf32, #tpu.memory_space<vmem>>, vector<8x256xf32>,
    %c0_80 = arith.constant 0 : index
    %c33_81 = arith.constant 33 : index
    %104 = vector.load %arg12[%c0_80, %c33_81] : memref<8x290xf32, #tpu.memory_space<vmem>>, vector<8x256xf32>
    %c56 = arith.constant 56 : index
    %c0_82 = arith.constant 0 : index
    %105 = vector.load %arg13[%c56, %c0_82] : memref<72x256xf32, #tpu.memory_space<vmem>>, vector<8x256xf32>
    tpu.vector_store %arg13[%c56, %c0_82], %104 {strides = array<i32>} : memref<72x256xf32, #tpu.memory_space<vmem>>, vector<8x256xf32>,
    %c0_83 = arith.constant 0 : index
    %c34_84 = arith.constant 34 : index
    %106 = vector.load %arg12[%c0_83, %c34_84] : memref<8x290xf32, #tpu.memory_space<vmem>>, vector<8x256xf32>
    %107 = vector.broadcast %1 : vector<1x256xf32> to vector<8x256xf32>
    %108 = arith.mulf %106, %107 : vector<8x256xf32>
    %c64 = arith.constant 64 : index
    %c0_85 = arith.constant 0 : index
    %109 = vector.load %arg13[%c64, %c0_85] : memref<72x256xf32, #tpu.memory_space<vmem>>, vector<8x256xf32>
    tpu.vector_store %arg13[%c64, %c0_85], %108 {strides = array<i32>} : memref<72x256xf32, #tpu.memory_space<vmem>>, vector<8x256xf32>,
    %c0_86 = arith.constant 0 : index
    %c0_87 = arith.constant 0 : index
    %110 = vector.load %arg5[%c0_86, %c0_87] : memref<4x72xf32, #tpu.memory_space<vmem>>, vector<4x72xf32>
    %c0_88 = arith.constant 0 : index
    %c0_89 = arith.constant 0 : index
    %111 = vector.load %arg13[%c0_88, %c0_89] : memref<72x256xf32, #tpu.memory_space<vmem>>, vector<72x256xf32>
    %cst_90 = arith.constant dense<0.000000e+00> : vector<4x256xf32>
    %112 = tpu.matmul %110, %111, %cst_90 {dimension_numbers = #tpu.dot_dimension_numbers<[1], [0], [0], [1], [0, 0, 1, 1], [], []>} : vector<4x72xf32>, vector<72x256xf32>, vector<4x256xf32> -> vector<4x256xf32>
    %113 = vector.shape_cast %112 : vector<4x256xf32> to vector<1x4x256xf32>
    %cst_91 = arith.constant dense<0.000000e+00> : vector<1xf32>
    %114 = vector.multi_reduction <add>, %113, %cst_91 [1, 2] : vector<1x4x256xf32> to vector<1xf32>
    %115 = vector.shape_cast %114 : vector<1xf32> to vector<1x1x1xf32>
    %116 = vector.extract %115[0, 0, 0] : f32 from vector<1x1x1xf32>
    %cst_92 = arith.constant 1.024000e+03 : f32
    %117 = arith.divf %116, %cst_92 : f32
    %118 = arith.mulf %112, %112 : vector<4x256xf32>
    %119 = vector.shape_cast %118 : vector<4x256xf32> to vector<1x4x256xf32>
    %cst_93 = arith.constant dense<0.000000e+00> : vector<1xf32>
    %120 = vector.multi_reduction <add>, %119, %cst_93 [1, 2] : vector<1x4x256xf32> to vector<1xf32>
    %121 = vector.shape_cast %120 : vector<1xf32> to vector<1x1x1xf32>
    %122 = vector.extract %121[0, 0, 0] : f32 from vector<1x1x1xf32>
    %cst_94 = arith.constant 1.024000e+03 : f32
    %123 = arith.divf %122, %cst_94 : f32
    %124 = arith.mulf %117, %117 : f32
    %125 = arith.subf %123, %124 : f32
    %126 = vector.broadcast %117 : f32 to vector<4x256xf32>
    %127 = arith.subf %112, %126 : vector<4x256xf32>
    %cst_95 = arith.constant 9.99999974E-6 : f32
    %128 = arith.addf %125, %cst_95 : f32
    %129 = math.rsqrt %128 : f32
    %130 = vector.broadcast %129 : f32 to vector<4x256xf32>
    %131 = arith.mulf %127, %130 : vector<4x256xf32>
    %c0_96 = arith.constant 0 : index
    %c0_97 = arith.constant 0 : index
    %132 = vector.load %arg6[%c0_96, %c0_97] : memref<4x1xf32, #tpu.memory_space<vmem>>, vector<4x1xf32>
    %133 = vector.broadcast %132 : vector<4x1xf32> to vector<4x256xf32>
    %134 = arith.mulf %131, %133 : vector<4x256xf32>
    %c0_98 = arith.constant 0 : index
    %c0_99 = arith.constant 0 : index
    %135 = vector.load %arg7[%c0_98, %c0_99] : memref<4x1xf32, #tpu.memory_space<vmem>>, vector<4x1xf32>
    %136 = vector.broadcast %135 : vector<4x1xf32> to vector<4x256xf32>
    %137 = arith.addf %134, %136 : vector<4x256xf32>
    %138 = arith.addf %137, %21 : vector<4x256xf32>
    %cst_100 = arith.constant 5.000000e-01 : f32
    %139 = vector.broadcast %cst_100 : f32 to vector<4x256xf32>
    %140 = arith.mulf %139, %138 : vector<4x256xf32>
    %cst_101 = arith.constant 0.707106769 : f32
    %141 = vector.broadcast %cst_101 : f32 to vector<4x256xf32>
    %142 = arith.mulf %138, %141 : vector<4x256xf32>
    %143 = math.erf %142 : vector<4x256xf32>
    %cst_102 = arith.constant 1.000000e+00 : f32
    %144 = vector.broadcast %cst_102 : f32 to vector<4x256xf32>
    %145 = arith.addf %144, %143 : vector<4x256xf32>
    %146 = arith.mulf %140, %145 : vector<4x256xf32>
    %c0_103 = arith.constant 0 : index
    %c0_104 = arith.constant 0 : index
    %c0_105 = arith.constant 0 : index
    %147 = vector.load %arg10[%c0_103, %c0_104, %c0_105] : memref<1x4x256xf32, #tpu.memory_space<vmem>>, vector<1x4x256xf32>
    %148 = vector.shape_cast %147 : vector<1x4x256xf32> to vector<4x256xf32>
    %149 = vector.shape_cast %146 : vector<4x256xf32> to vector<1x4x256xf32>
    tpu.vector_store %arg10[%c0_103, %c0_104, %c0_105], %149 {strides = array<i32>} : memref<1x4x256xf32, #tpu.memory_space<vmem>>, vector<1x4x256xf32>,
    return
  }
  func.func @transform_0(%arg0: i32) -> (i32, i32, i32) {
    %c0_i32 = arith.constant 0 : i32
    %c0_i32_0 = arith.constant 0 : i32
    %c0_i32_1 = arith.constant 0 : i32
    return %arg0, %c0_i32, %c0_i32_0 : i32, i32, i32
  }
  func.func @transform_1(%arg0: i32) -> (i32, i32) {
    %c0_i32 = arith.constant 0 : i32
    %c0_i32_0 = arith.constant 0 : i32
    %c0_i32_1 = arith.constant 0 : i32
    return %c0_i32, %c0_i32_0 : i32, i32
  }
  func.func @transform_2(%arg0: i32) -> (i32, i32) {
    %c0_i32 = arith.constant 0 : i32
    %c0_i32_0 = arith.constant 0 : i32
    %c0_i32_1 = arith.constant 0 : i32
    return %c0_i32, %c0_i32_0 : i32, i32
  }
  func.func @transform_3(%arg0: i32) -> (i32, i32) {
    %c0_i32 = arith.constant 0 : i32
    %c0_i32_0 = arith.constant 0 : i32
    %c0_i32_1 = arith.constant 0 : i32
    return %c0_i32, %c0_i32_0 : i32, i32
  }
  func.func @transform_4(%arg0: i32) -> (i32, i32) {
    %c0_i32 = arith.constant 0 : i32
    %c0_i32_0 = arith.constant 0 : i32
    %c0_i32_1 = arith.constant 0 : i32
    return %c0_i32, %c0_i32_0 : i32, i32
  }
  func.func @transform_5(%arg0: i32) -> (i32, i32) {
    %c0_i32 = arith.constant 0 : i32
    %c0_i32_0 = arith.constant 0 : i32
    %c0_i32_1 = arith.constant 0 : i32
    return %c0_i32, %c0_i32_0 : i32, i32
  }
  func.func @transform_6(%arg0: i32) -> (i32, i32) {
    %c0_i32 = arith.constant 0 : i32
    %c0_i32_0 = arith.constant 0 : i32
    %c0_i32_1 = arith.constant 0 : i32
    return %c0_i32, %c0_i32_0 : i32, i32
  }
  func.func @transform_7(%arg0: i32) -> (i32, i32) {
    %c0_i32 = arith.constant 0 : i32
    %c0_i32_0 = arith.constant 0 : i32
    %c0_i32_1 = arith.constant 0 : i32
    return %c0_i32, %c0_i32_0 : i32, i32
  }
  func.func @transform_8(%arg0: i32) -> (i32, i32) {
    %c0_i32 = arith.constant 0 : i32
    %c0_i32_0 = arith.constant 0 : i32
    %c0_i32_1 = arith.constant 0 : i32
    return %c0_i32, %c0_i32_0 : i32, i32
  }
  func.func @transform_9(%arg0: i32) -> (i32, i32, i32) {
    %c0_i32 = arith.constant 0 : i32
    %c0_i32_0 = arith.constant 0 : i32
    %c0_i32_1 = arith.constant 0 : i32
    return %arg0, %c0_i32, %c0_i32_0 : i32, i32, i32
  }
}

</mosaic_0001>

<llo_original>
// kernel: tpu_custom_call.1
$region0: #{tpu_custom_call.1}
  #allocation0 [shape = 'u32[]', space=smem, size = 0x4, offset = 0x4, fixed_abs, tag = 'smem constant byte address 0x4 - core index']
  #allocation1 [shape = 'u32[144,128]{1,0:T(1,128)}', space=vmem, size = 0x12000, scoped, tag = 'internal scratch']
  #allocation2 [shape = 'f32[36,256]{1,0:T(8,128)}', space=vmem, size = 0xa000, scoped, tag = 'scratch operand']
  #allocation3 [shape = 'f32[8,290]{1,0:T(8,128)}', space=vmem, size = 0x3000, scoped, tag = 'scratch operand']
  #allocation4 [shape = 'f32[72,256]{1,0:T(8,128)}', space=vmem, size = 0x12000, scoped, tag = 'scratch operand']
  %s0 = inlined_call_operand.vmem [shape: f32[2,4,290], index: 0, kind: input, shape index: {}]
  %s1 = inlined_call_operand.hbm [shape: f32[8,36], index: 1, kind: input, shape index: {}]
  %s2 = inlined_call_operand.vmem [shape: f32[8,1], index: 2, kind: input, shape index: {}]
  %s3 = inlined_call_operand.vmem [shape: f32[8,1], index: 3, kind: input, shape index: {}]
  %s4 = inlined_call_operand.vmem [shape: f32[4,72], index: 4, kind: input, shape index: {}]
  %s5 = inlined_call_operand.vmem [shape: f32[4,1], index: 5, kind: input, shape index: {}]
  %s6 = inlined_call_operand.vmem [shape: f32[4,1], index: 6, kind: input, shape index: {}]
  %s7 = inlined_call_operand.vmem [shape: f32[1,256], index: 7, kind: input, shape index: {}]
  %s8 = inlined_call_operand.vmem [shape: f32[1,256], index: 8, kind: input, shape index: {}]
  %s9 = inlined_call_operand.hbm [shape: f32[2,4,256], index: 9, kind: output, shape index: {}]
  %s10 = sld [smem:[#allocation0]]
  $region73: #{tpu_custom_call.1} parent=0
    _
  %s12 = ssub.s32 1, %s10
  %s13 = scalar_select 0, %s12, %s10
  $region1: #{tpu_custom_call.1} parent=0
    #allocation5 [shape = 'u8[4096]{0}', space=vmem, size = 0x1000, scoped, tag = 'input window, operand 1, single buffered']
    #allocation6 [shape = 's32[2]{0}', space=sflag, size = 0x8, scoped, tag = 'scoped memory for tpu_custom_call.1']
    #allocation7 [shape = 's32[2]{0}', space=sflag, size = 0x8, scoped, tag = 'scoped memory for tpu_custom_call.1']
    #allocation8 [shape = 'u8[8192]{0}', space=vmem, size = 0x2000, scoped, tag = 'output window, operand 0']
    %14 = vsyncpa [#allocation6], 0
    %15 = vsyncpa [#allocation7], 0
    %s16 = scalar_lea.sflag [#allocation7], 1
    %17 = vsyncpa %s16, 0
    loop: start=0, step=1, limit=4
    $region2: #{tpu_custom_call.1} parent=1 // loop_pre_header
      _
    $region3: #{tpu_custom_call.1} parent=1 // loop_header
      %s19 = sphi 0, %s23
      %p20 = scmp.ge.s32.totalorder %s19, 4
      %s29 = sphi 0, %s31
      %s32 = sphi 0, %s29
      %s33 = sphi 0, %s32
      %s49 = sphi 0, %s33
      %s53 = sphi 0, %s53
      %s55 = sphi 0, %s53
      %s56 = sphi 0, %s55
      %s70 = sphi 0, %s56
      %s74 = sphi 0, %s74
      %s76 = sphi 0, %s74
      %s77 = sphi 0, %s76
      %s91 = sphi 0, %s77
      %s95 = sphi 0, %s95
      %s97 = sphi 0, %s95
      %s98 = sphi 0, %s97
      %s112 = sphi 0, %s98
      %s116 = sphi 0, %s116
      %s118 = sphi 0, %s116
      %s119 = sphi 0, %s118
      %s133 = sphi 0, %s119
      %s137 = sphi 0, %s137
      %s139 = sphi 0, %s137
      %s140 = sphi 0, %s139
      %s154 = sphi 0, %s140
      %s158 = sphi 0, %s158
      %s160 = sphi 0, %s158
      %s161 = sphi 0, %s160
      %s175 = sphi 0, %s161
      %s179 = sphi 0, %s179
      %s181 = sphi 0, %s179
      %s182 = sphi 0, %s181
      %s196 = sphi 0, %s182
      %s200 = sphi 0, %s200
      %s202 = sphi 0, %s200
      %s203 = sphi 0, %s202
      %s217 = sphi 0, %s203
      %s223 = sphi 0, %s225
      %s226 = sphi 0, %s223
      %s227 = sphi 0, %s226
      %s243 = sphi 0, %s227
    $region4: #{tpu_custom_call.1} parent=1 // loop_header_branch
      %22 = sbr.rel (%p20) target = $region8
    $region5: #{tpu_custom_call.1} parent=1 // loop_body
      %s24 = ssub.s32 %s19, 1
      %s25 = ssub.s32 %s19, 2
      %s26 = sadd.s32 %s19, 1
      %s27 = ssub.s32 %s19, %s26
      %p28 = scmp.eq.s32.totalorder %s27, 0
      %s30 = sadd.s32 %s29, 1
      %s31 = scalar_select %p28, %s29, %s30
      %p34 = pneg %p28
      %p35 = scmp.eq.s32.totalorder %s19, 1
      %p36 = por %p34, %p35
      %p37 = scmp.ne.s32.totalorder %s29, %s32
      %p38 = scmp.eq.s32.totalorder %s19, 0
      %p39 = por %p37, %p38
      %p40 = scmp.ne.s32.totalorder %s29, %s32
      %p41 = scmp.eq.s32.totalorder %s24, 1
      %p42 = por %p40, %p41
      %p43 = scmp.ne.s32.totalorder %s32, %s33
      %p44 = scmp.eq.s32.totalorder %s24, 0
      %p45 = por %p43, %p44
      %p46 = scmp.ne.s32.totalorder %s32, %s33
      %p47 = scmp.eq.s32.totalorder %s25, 1
      %p48 = por %p46, %p47
      %p50 = scmp.ne.s32.totalorder %s33, %s49
      %p51 = scmp.eq.s32.totalorder %s25, 0
      %p52 = por %p50, %p51
      %s54 = sadd.s32 %s53, 1
      %p57 = scmp.eq.s32.totalorder %s19, 1
      %p58 = scmp.ne.s32.totalorder %s53, %s55
      %p59 = scmp.eq.s32.totalorder %s19, 0
      %p60 = por %p58, %p59
      %p61 = scmp.ne.s32.totalorder %s53, %s55
      %p62 = scmp.eq.s32.totalorder %s24, 1
      %p63 = por %p61, %p62
      %p64 = scmp.ne.s32.totalorder %s55, %s56
      %p65 = scmp.eq.s32.totalorder %s24, 0
      %p66 = por %p64, %p65
      %p67 = scmp.ne.s32.totalorder %s55, %s56
      %p68 = scmp.eq.s32.totalorder %s25, 1
      %p69 = por %p67, %p68
      %p71 = scmp.ne.s32.totalorder %s56, %s70
      %p72 = scmp.eq.s32.totalorder %s25, 0
      %p73 = por %p71, %p72
      %s75 = sadd.s32 %s74, 1
      %p78 = scmp.eq.s32.totalorder %s19, 1
      %p79 = scmp.ne.s32.totalorder %s74, %s76
      %p80 = scmp.eq.s32.totalorder %s19, 0
      %p81 = por %p79, %p80
      %p82 = scmp.ne.s32.totalorder %s74, %s76
      %p83 = scmp.eq.s32.totalorder %s24, 1
      %p84 = por %p82, %p83
      %p85 = scmp.ne.s32.totalorder %s76, %s77
      %p86 = scmp.eq.s32.totalorder %s24, 0
      %p87 = por %p85, %p86
      %p88 = scmp.ne.s32.totalorder %s76, %s77
      %p89 = scmp.eq.s32.totalorder %s25, 1
      %p90 = por %p88, %p89
      %p92 = scmp.ne.s32.totalorder %s77, %s91
      %p93 = scmp.eq.s32.totalorder %s25, 0
      %p94 = por %p92, %p93
      %s96 = sadd.s32 %s95, 1
      %p99 = scmp.eq.s32.totalorder %s19, 1
      %p100 = scmp.ne.s32.totalorder %s95, %s97
      %p101 = scmp.eq.s32.totalorder %s19, 0
      %p102 = por %p100, %p101
      %p103 = scmp.ne.s32.totalorder %s95, %s97
      %p104 = scmp.eq.s32.totalorder %s24, 1
      %p105 = por %p103, %p104
      %p106 = scmp.ne.s32.totalorder %s97, %s98
      %p107 = scmp.eq.s32.totalorder %s24, 0
      %p108 = por %p106, %p107
      %p109 = scmp.ne.s32.totalorder %s97, %s98
      %p110 = scmp.eq.s32.totalorder %s25, 1
      %p111 = por %p109, %p110
      %p113 = scmp.ne.s32.totalorder %s98, %s112
      %p114 = scmp.eq.s32.totalorder %s25, 0
      %p115 = por %p113, %p114
      %s117 = sadd.s32 %s116, 1
      %p120 = scmp.eq.s32.totalorder %s19, 1
      %p121 = scmp.ne.s32.totalorder %s116, %s118
      %p122 = scmp.eq.s32.totalorder %s19, 0
      %p123 = por %p121, %p122
      %p124 = scmp.ne.s32.totalorder %s116, %s118
      %p125 = scmp.eq.s32.totalorder %s24, 1
      %p126 = por %p124, %p125
      %p127 = scmp.ne.s32.totalorder %s118, %s119
      %p128 = scmp.eq.s32.totalorder %s24, 0
      %p129 = por %p127, %p128
      %p130 = scmp.ne.s32.totalorder %s118, %s119
      %p131 = scmp.eq.s32.totalorder %s25, 1
      %p132 = por %p130, %p131
      %p134 = scmp.ne.s32.totalorder %s119, %s133
      %p135 = scmp.eq.s32.totalorder %s25, 0
      %p136 = por %p134, %p135
      %s138 = sadd.s32 %s137, 1
      %p141 = scmp.eq.s32.totalorder %s19, 1
      %p142 = scmp.ne.s32.totalorder %s137, %s139
      %p143 = scmp.eq.s32.totalorder %s19, 0
      %p144 = por %p142, %p143
      %p145 = scmp.ne.s32.totalorder %s137, %s139
      %p146 = scmp.eq.s32.totalorder %s24, 1
      %p147 = por %p145, %p146
      %p148 = scmp.ne.s32.totalorder %s139, %s140
      %p149 = scmp.eq.s32.totalorder %s24, 0
      %p150 = por %p148, %p149
      %p151 = scmp.ne.s32.totalorder %s139, %s140
      %p152 = scmp.eq.s32.totalorder %s25, 1
      %p153 = por %p151, %p152
      %p155 = scmp.ne.s32.totalorder %s140, %s154
      %p156 = scmp.eq.s32.totalorder %s25, 0
      %p157 = por %p155, %p156
      %s159 = sadd.s32 %s158, 1
      %p162 = scmp.eq.s32.totalorder %s19, 1
      %p163 = scmp.ne.s32.totalorder %s158, %s160
      %p164 = scmp.eq.s32.totalorder %s19, 0
      %p165 = por %p163, %p164
      %p166 = scmp.ne.s32.totalorder %s158, %s160
      %p167 = scmp.eq.s32.totalorder %s24, 1
      %p168 = por %p166, %p167
      %p169 = scmp.ne.s32.totalorder %s160, %s161
      %p170 = scmp.eq.s32.totalorder %s24, 0
      %p171 = por %p169, %p170
      %p172 = scmp.ne.s32.totalorder %s160, %s161
      %p173 = scmp.eq.s32.totalorder %s25, 1
      %p174 = por %p172, %p173
      %p176 = scmp.ne.s32.totalorder %s161, %s175
      %p177 = scmp.eq.s32.totalorder %s25, 0
      %p178 = por %p176, %p177
      %s180 = sadd.s32 %s179, 1
      %p183 = scmp.eq.s32.totalorder %s19, 1
      %p184 = scmp.ne.s32.totalorder %s179, %s181
      %p185 = scmp.eq.s32.totalorder %s19, 0
      %p186 = por %p184, %p185
      %p187 = scmp.ne.s32.totalorder %s179, %s181
      %p188 = scmp.eq.s32.totalorder %s24, 1
      %p189 = por %p187, %p188
      %p190 = scmp.ne.s32.totalorder %s181, %s182
      %p191 = scmp.eq.s32.totalorder %s24, 0
      %p192 = por %p190, %p191
      %p193 = scmp.ne.s32.totalorder %s181, %s182
      %p194 = scmp.eq.s32.totalorder %s25, 1
      %p195 = por %p193, %p194
      %p197 = scmp.ne.s32.totalorder %s182, %s196
      %p198 = scmp.eq.s32.totalorder %s25, 0
      %p199 = por %p197, %p198
      %s201 = sadd.s32 %s200, 1
      %p204 = scmp.eq.s32.totalorder %s19, 1
      %p205 = scmp.ne.s32.totalorder %s200, %s202
      %p206 = scmp.eq.s32.totalorder %s19, 0
      %p207 = por %p205, %p206
      %p208 = scmp.ne.s32.totalorder %s200, %s202
      %p209 = scmp.eq.s32.totalorder %s24, 1
      %p210 = por %p208, %p209
      %p211 = scmp.ne.s32.totalorder %s202, %s203
      %p212 = scmp.eq.s32.totalorder %s24, 0
      %p213 = por %p211, %p212
      %p214 = scmp.ne.s32.totalorder %s202, %s203
      %p215 = scmp.eq.s32.totalorder %s25, 1
      %p216 = por %p214, %p215
      %p218 = scmp.ne.s32.totalorder %s203, %s217
      %p219 = scmp.eq.s32.totalorder %s25, 0
      %p220 = por %p218, %p219
      %s221 = ssub.s32 %s19, %s26
      %p222 = scmp.eq.s32.totalorder %s221, 0
      %s224 = sadd.s32 %s223, 1
      %s225 = scalar_select %p222, %s223, %s224
      %p228 = pneg %p222
      %p229 = scmp.eq.s32.totalorder %s19, 1
      %p230 = por %p228, %p229
      %p231 = scmp.ne.s32.totalorder %s223, %s226
      %p232 = scmp.eq.s32.totalorder %s19, 0
      %p233 = por %p231, %p232
      %p234 = scmp.ne.s32.totalorder %s223, %s226
      %p235 = scmp.eq.s32.totalorder %s24, 1
      %p236 = por %p234, %p235
      %p237 = scmp.ne.s32.totalorder %s226, %s227
      %p238 = scmp.eq.s32.totalorder %s24, 0
      %p239 = por %p237, %p238
      %p240 = scmp.ne.s32.totalorder %s226, %s227
      %p241 = scmp.eq.s32.totalorder %s25, 1
      %p242 = por %p240, %p241
      %p244 = scmp.ne.s32.totalorder %s227, %s243
      %p245 = scmp.eq.s32.totalorder %s25, 0
      %p246 = por %p244, %p245
      %p247 = scmp.le.s32.totalorder 1, %s19
      %p248 = scmp.lt.s32.totalorder %s19, 3
      %p249 = pnand %p247, %p248
      %p250 = pneg %p249
      // Predicated region
      $region9: #{tpu_custom_call.1} parent=5 // pred_check
        _
      $region10: #{tpu_custom_call.1} parent=5 // pred_check_branch
        %252 = sbr.rel (%p249) target = $region12
      $region11: #{tpu_custom_call.1} parent=5 // pred_region
        %s253 = ssub.s32 %s19, 1
        // Predicated region
        $region13: #{tpu_custom_call.1} parent=11 // pred_check
          %p254 = pneg %p66
        $region14: #{tpu_custom_call.1} parent=11 // pred_check_branch
          %256 = sbr.rel (%p254) target = $region16
        $region15: #{tpu_custom_call.1} parent=11 // pred_region
          %s258 = ssub.s32 128, 128
          %259 = vsyncadd [#allocation6], %s258
          %s261 = sshll.u32 [#allocation5], 4
          %s262 = int_to_ptr.vmem [resolvable:$true] %s261
          %264 = dma.hbm_to_vmem [thread:$0]  %s1, 128, %s262, [#allocation6]
        $region16: #{tpu_custom_call.1} parent=11 // pred_fallthru
          _
        // Predicated region
        $region17: #{tpu_custom_call.1} parent=11 // pred_check
          %p265 = pneg %p87
        $region18: #{tpu_custom_call.1} parent=11 // pred_check_branch
          %267 = sbr.rel (%p265) target = $region20
        $region19: #{tpu_custom_call.1} parent=11 // pred_region
          _
        $region20: #{tpu_custom_call.1} parent=11 // pred_fallthru
          _
        // Predicated region
        $region21: #{tpu_custom_call.1} parent=11 // pred_check
          %p268 = pneg %p108
        $region22: #{tpu_custom_call.1} parent=11 // pred_check_branch
          %270 = sbr.rel (%p268) target = $region24
        $region23: #{tpu_custom_call.1} parent=11 // pred_region
          _
        $region24: #{tpu_custom_call.1} parent=11 // pred_fallthru
          _
        // Predicated region
        $region25: #{tpu_custom_call.1} parent=11 // pred_check
          %p271 = pneg %p129
        $region26: #{tpu_custom_call.1} parent=11 // pred_check_branch
          %273 = sbr.rel (%p271) target = $region28
        $region27: #{tpu_custom_call.1} parent=11 // pred_region
          _
        $region28: #{tpu_custom_call.1} parent=11 // pred_fallthru
          _
        // Predicated region
        $region29: #{tpu_custom_call.1} parent=11 // pred_check
          %p274 = pneg %p150
        $region30: #{tpu_custom_call.1} parent=11 // pred_check_branch
          %276 = sbr.rel (%p274) target = $region32
        $region31: #{tpu_custom_call.1} parent=11 // pred_region
          _
        $region32: #{tpu_custom_call.1} parent=11 // pred_fallthru
          _
        // Predicated region
        $region33: #{tpu_custom_call.1} parent=11 // pred_check
          %p277 = pneg %p171
        $region34: #{tpu_custom_call.1} parent=11 // pred_check_branch
          %279 = sbr.rel (%p277) target = $region36
        $region35: #{tpu_custom_call.1} parent=11 // pred_region
          _
        $region36: #{tpu_custom_call.1} parent=11 // pred_fallthru
          _
        // Predicated region
        $region37: #{tpu_custom_call.1} parent=11 // pred_check
          %p280 = pneg %p192
        $region38: #{tpu_custom_call.1} parent=11 // pred_check_branch
          %282 = sbr.rel (%p280) target = $region40
        $region39: #{tpu_custom_call.1} parent=11 // pred_region
          _
        $region40: #{tpu_custom_call.1} parent=11 // pred_fallthru
          _
        // Predicated region
        $region41: #{tpu_custom_call.1} parent=11 // pred_check
          %p283 = pneg %p213
        $region42: #{tpu_custom_call.1} parent=11 // pred_check_branch
          %285 = sbr.rel (%p283) target = $region44
        $region43: #{tpu_custom_call.1} parent=11 // pred_region
          _
        $region44: #{tpu_custom_call.1} parent=11 // pred_fallthru
          _
      $region12: #{tpu_custom_call.1} parent=5 // pred_fallthru
        _
      %p286 = scmp.lt.s32.totalorder %s19, 2
      // Predicated region
      $region45: #{tpu_custom_call.1} parent=5 // pred_check
        %p287 = pneg %p286
      $region46: #{tpu_custom_call.1} parent=5 // pred_check_branch
        %289 = sbr.rel (%p287) target = $region48
      $region47: #{tpu_custom_call.1} parent=5 // pred_region
        // Predicated region
        $region49: #{tpu_custom_call.1} parent=47 // pred_check
          %p290 = pneg %p39
        $region50: #{tpu_custom_call.1} parent=47 // pred_check_branch
          %292 = sbr.rel (%p290) target = $region52
        $region51: #{tpu_custom_call.1} parent=47 // pred_region
          %p293 = scmp.lt.s32.totalorder %s19, 1
          %s294 = scalar_select %p293, %s19, 1
          %s295 = smul.addr %s294, 3
          %s296 = smul.addr %s295, 4
          %s297 = scalar_lea.vmem %s0, %s296
        $region52: #{tpu_custom_call.1} parent=47 // pred_fallthru
          _
      $region48: #{tpu_custom_call.1} parent=5 // pred_fallthru
        _
      %p298 = scmp.le.s32.totalorder 1, %s19
      %p299 = scmp.lt.s32.totalorder %s19, 3
      %p300 = pnand %p298, %p299
      %p301 = pneg %p300
      // Predicated region
      $region53: #{tpu_custom_call.1} parent=5 // pred_check
        _
      $region54: #{tpu_custom_call.1} parent=5 // pred_check_branch
        %303 = sbr.rel (%p300) target = $region56
      $region55: #{tpu_custom_call.1} parent=5 // pred_region
        %s304 = ssub.s32 %s19, 1
        // Predicated region
        $region57: #{tpu_custom_call.1} parent=55 // pred_check
          %p305 = pneg %p66
        $region58: #{tpu_custom_call.1} parent=55 // pred_check_branch
          %307 = sbr.rel (%p305) target = $region60
        $region59: #{tpu_custom_call.1} parent=55 // pred_region
          %308 = dma.done [#allocation6], 128
        $region60: #{tpu_custom_call.1} parent=55 // pred_fallthru
          _
        %p309 = scmp.lt.s32.totalorder %s24, 1
        %s310 = scalar_select %p309, %s24, 1
        %s311 = smul.addr %s310, 3
        %s312 = smul.addr %s311, 4
        %s313 = scalar_lea.vmem %s0, %s312
        %p314 = pneg %p45
        %p315 = pneg %p42
        %p316 = pneg %p66
        %p317 = pneg %p63
        %p318 = pneg %p87
        %p319 = pneg %p84
        %p320 = pneg %p108
        %p321 = pneg %p105
        %p322 = pneg %p129
        %p323 = pneg %p126
        %p324 = pneg %p150
        %p325 = pneg %p147
        %p326 = pneg %p171
        %p327 = pneg %p168
        %p328 = pneg %p192
        %p329 = pneg %p189
        %p330 = pneg %p213
        %p331 = pneg %p210
        %p332 = pneg %p239
        %p333 = pneg %p236
        %s334 = sand.u32 %s226, 1
        %s335 = scalar_lea.sflag [#allocation7], %s334
        %s336 = sand.u32 %s226, 1
        %s337 = smul.addr %s336, 8
        %s338 = scalar_lea.vmem [#allocation8], %s337
        %p339 = scmp.lt.s32.totalorder %s24, 1
        %s340 = scalar_select %p339, %s24, 1
        %s341 = smul.addr %s340, 3
        %s342 = smul.addr %s341, 4
        %s343 = scalar_lea.vmem %s0, %s342
        %v344 = vld [vmem:[%s7] sm:$0x3]
        %v345 = vld [vmem:[%s8] sm:$0x3]
        %v346 = vld [vmem:[%s343] sm:$0xff]
        %v348 = vlaneseq
        %v349 = vshrl.u32 %v348, 7
        %v350 = vsub.s32 0, %v349
        %v351 = vrot.slane %v344, %v350
        %v352 = vlaneseq
        %v353 = vshrl.u32 %v352, 7
        %v354 = vsub.s32 1, %v353
        %v355 = vrot.slane %v344, %v354
        %v356 = vcombine.low %v351, %v355
        %v358 = vmul.f32 %v346, %v356
        %v360 = vcombine.high %v358, %v358
        %362 = vst [vmem:[#allocation2] sm:$0xf] %v358
        %363 = vst [vmem:[#allocation2 + $0x8] sm:$0xf] %v360
        %v364 = vld [vmem:[%s343] sm:$0xff]
        %v365 = vld [vmem:[%s343 + $0x8] sm:$0xf]
        %v368 = vcombine.low %v364, %v364
        %v369 = vcombine.low %v365, %v365
        %370 = vrot.lane.b32.xlu0 %v368, 127
        %v371 = vpop.permute.xlu0 %370
        %372 = vrot.lane.b32.xlu0 %v364, 127
        %v373 = vpop.permute.xlu0 %372
        %374 = vrot.lane.b32.xlu0 %v369, 127
        %v375 = vpop.permute.xlu0 %374
        %vm376 = vcmask 1039360
        %v377 = vsel %vm376, %v371, %v373
        %v378 = vsel %vm376, %v373, %v375
        %381 = vst [vmem:[#allocation2] sm:$0xf0] %v377
        %382 = vst [vmem:[#allocation2 + $0x8] sm:$0xf0] %v378
        %v383 = vld [vmem:[%s343] sm:$0xff]
        %v384 = vld [vmem:[%s343 + $0x8] sm:$0xf]
        %v386 = vlaneseq
        %v387 = vshrl.u32 %v386, 7
        %v388 = vsub.s32 0, %v387
        %v389 = vrot.slane %v345, %v388
        %v390 = vlaneseq
        %v391 = vshrl.u32 %v390, 7
        %v392 = vsub.s32 1, %v391
        %v393 = vrot.slane %v345, %v392
        %v394 = vcombine.low %v389, %v393
        %395 = vrot.lane.b32.xlu0 %v394, 2
        %v396 = vpop.permute.xlu0 %395
        %v397 = vrot.slane %v396, 4
        %vm398 = vcmask 15360
        %v399 = vsel %vm398, %v397, %v396
        %v402 = vmul.f32 %v383, %v399
        %v403 = vmul.f32 %v384, %v397
        %v406 = vcombine.high %v402, %v402
        %407 = vrot.lane.b32.xlu0 %v402, 126
        %v408 = vpop.permute.xlu0 %407
        %409 = vrot.lane.b32.xlu0 %v406, 126
        %v410 = vpop.permute.xlu0 %409
        %411 = vrot.lane.b32.xlu0 %v403, 126
        %v412 = vpop.permute.xlu0 %411
        %vm413 = vcmask 1031168
        %v414 = vsel %vm413, %v408, %v410
        %v415 = vsel %vm413, %v410, %v412
        %418 = vst [vmem:[#allocation2 + $0x10] sm:$0xf] %v414
        %419 = vst [vmem:[#allocation2 + $0x18] sm:$0xf] %v415
        %v420 = vld [vmem:[%s343] sm:$0xff]
        %v421 = vld [vmem:[%s343 + $0x8] sm:$0xf]
        %422 = vrot.lane.b32.xlu0 %v356, 16
        %v423 = vpop.permute.xlu0 %422
        %v424 = vrot.slane %v423, 4
        %vm425 = vcmask 130048
        %v426 = vsel %vm425, %v424, %v423
        %v429 = vmul.f32 %v420, %v426
        %v430 = vmul.f32 %v421, %v424
        %v433 = vcombine.low %v429, %v429
        %v434 = vcombine.low %v430, %v430
        %435 = vrot.lane.b32.xlu0 %v433, 112
        %v436 = vpop.permute.xlu0 %435
        %437 = vrot.lane.b32.xlu0 %v429, 112
        %v438 = vpop.permute.xlu0 %437
        %439 = vrot.lane.b32.xlu0 %v434, 112
        %v440 = vpop.permute.xlu0 %439
        %vm441 = vcmask 916480
        %v442 = vsel %vm441, %v436, %v438
        %v443 = vsel %vm441, %v438, %v440
        %446 = vst [vmem:[#allocation2 + $0x10] sm:$0xf0] %v442
        %447 = vst [vmem:[#allocation2 + $0x18] sm:$0xf0] %v443
        %v448 = vld [vmem:[%s343] sm:$0xff]
        %v449 = vld [vmem:[%s343 + $0x8] sm:$0xf]
        %v452 = vcombine.high %v448, %v448
        %453 = vrot.lane.b32.xlu0 %v448, 111
        %v454 = vpop.permute.xlu0 %453
        %455 = vrot.lane.b32.xlu0 %v452, 111
        %v456 = vpop.permute.xlu0 %455
        %457 = vrot.lane.b32.xlu0 %v449, 111
        %v458 = vpop.permute.xlu0 %457
        %vm459 = vcmask 908288
        %v460 = vsel %vm459, %v454, %v456
        %v461 = vsel %vm459, %v456, %v458
        %464 = vst [vmem:[#allocation2 + $0x20] sm:$0xf] %v460
        %465 = vst [vmem:[#allocation2 + $0x28] sm:$0xf] %v461
        %v466 = vld [vmem:[%s343] sm:$0xff]
        %v467 = vld [vmem:[%s343 + $0x8] sm:$0xf]
        %468 = vrot.lane.b32.xlu0 %v394, 18
        %v469 = vpop.permute.xlu0 %468
        %v470 = vrot.slane %v469, 4
        %vm471 = vcmask 146432
        %v472 = vsel %vm471, %v470, %v469
        %v475 = vmul.f32 %v466, %v472
        %v476 = vmul.f32 %v467, %v470
        %v479 = vcombine.low %v475, %v475
        %v480 = vcombine.low %v476, %v476
        %481 = vrot.lane.b32.xlu0 %v479, 110
        %v482 = vpop.permute.xlu0 %481
        %483 = vrot.lane.b32.xlu0 %v475, 110
        %v484 = vpop.permute.xlu0 %483
        %485 = vrot.lane.b32.xlu0 %v480, 110
        %v486 = vpop.permute.xlu0 %485
        %vm487 = vcmask 900096
        %v488 = vsel %vm487, %v482, %v484
        %v489 = vsel %vm487, %v484, %v486
        %492 = vst [vmem:[#allocation2 + $0x20] sm:$0xf0] %v488
        %493 = vst [vmem:[#allocation2 + $0x28] sm:$0xf0] %v489
        %v494 = vld [vmem:[%s343] sm:$0xff]
        %v495 = vld [vmem:[%s343 + $0x8] sm:$0xf]
        %496 = vrot.lane.b32.xlu0 %v356, 32
        %v497 = vpop.permute.xlu0 %496
        %v498 = vrot.slane %v497, 4
        %vm499 = vcmask 261120
        %v500 = vsel %vm499, %v498, %v497
        %v503 = vmul.f32 %v494, %v500
        %v504 = vmul.f32 %v495, %v498
        %v507 = vcombine.high %v503, %v503
        %508 = vrot.lane.b32.xlu0 %v503, 96
        %v509 = vpop.permute.xlu0 %508
        %510 = vrot.lane.b32.xlu0 %v507, 96
        %v511 = vpop.permute.xlu0 %510
        %512 = vrot.lane.b32.xlu0 %v504, 96
        %v513 = vpop.permute.xlu0 %512
        %vm514 = vcmask 785408
        %v515 = vsel %vm514, %v509, %v511
        %v516 = vsel %vm514, %v511, %v513
        %519 = vst [vmem:[#allocation2 + $0x30] sm:$0xf] %v515
        %520 = vst [vmem:[#allocation2 + $0x38] sm:$0xf] %v516
        %v521 = vld [vmem:[%s343] sm:$0xff]
        %v522 = vld [vmem:[%s343 + $0x8] sm:$0xf]
        %v525 = vcombine.low %v521, %v521
        %v526 = vcombine.low %v522, %v522
        %527 = vrot.lane.b32.xlu0 %v525, 95
        %v528 = vpop.permute.xlu0 %527
        %529 = vrot.lane.b32.xlu0 %v521, 95
        %v530 = vpop.permute.xlu0 %529
        %531 = vrot.lane.b32.xlu0 %v526, 95
        %v532 = vpop.permute.xlu0 %531
        %vm533 = vcmask 777216
        %v534 = vsel %vm533, %v528, %v530
        %v535 = vsel %vm533, %v530, %v532
        %538 = vst [vmem:[#allocation2 + $0x30] sm:$0xf0] %v534
        %539 = vst [vmem:[#allocation2 + $0x38] sm:$0xf0] %v535
        %v540 = vld [vmem:[%s343] sm:$0xff]
        %v541 = vld [vmem:[%s343 + $0x8] sm:$0xf]
        %542 = vrot.lane.b32.xlu0 %v394, 34
        %v543 = vpop.permute.xlu0 %542
        %v544 = vrot.slane %v543, 4
        %vm545 = vcmask 277504
        %v546 = vsel %vm545, %v544, %v543
        %v549 = vmul.f32 %v540, %v546
        %v550 = vmul.f32 %v541, %v544
        %v553 = vcombine.high %v549, %v549
        %554 = vrot.lane.b32.xlu0 %v549, 94
        %v555 = vpop.permute.xlu0 %554
        %556 = vrot.lane.b32.xlu0 %v553, 94
        %v557 = vpop.permute.xlu0 %556
        %558 = vrot.lane.b32.xlu0 %v550, 94
        %v559 = vpop.permute.xlu0 %558
        %vm560 = vcmask 769024
        %v561 = vsel %vm560, %v555, %v557
        %v562 = vsel %vm560, %v557, %v559
        %565 = vst [vmem:[#allocation2 + $0x40] sm:$0xf] %v561
        %566 = vst [vmem:[#allocation2 + $0x48] sm:$0xf] %v562
        %v567 = vld [vmem:[#allocation5] sm:$0xff]
        %v568 = vld [vmem:[#allocation2] sm:$0xff]
        %v569 = vld [vmem:[#allocation2 + $0x8] sm:$0xff]
        %v570 = vld [vmem:[#allocation2 + $0x10] sm:$0xff]
        %v571 = vld [vmem:[#allocation2 + $0x18] sm:$0xff]
        %v572 = vld [vmem:[#allocation2 + $0x20] sm:$0xff]
        %v573 = vld [vmem:[#allocation2 + $0x28] sm:$0xff]
        %v574 = vld [vmem:[#allocation2 + $0x30] sm:$0xff]
        %v575 = vld [vmem:[#allocation2 + $0x38] sm:$0xff]
        %v576 = vld [vmem:[#allocation2 + $0x40] sm:$0xf]
        %v577 = vld [vmem:[#allocation2 + $0x48] sm:$0xf]
        %vm578 = vcmask 293888
        %v580 = vsel %vm578, %v567, 0
        %vm582 = vcmask 1043456
        %v584 = vsel %vm582, %v576, 0
        %v587 = vsel %vm582, %v577, 0
        %589 = vmatprep.subr.mxu0 %v569
        %590 = vmatpush1.msra.mxu0 %v568
        %591 = vmatprep.subr.mxu0 %v571
        %592 = vmatpush1.msra.mxu0 %v570
        %593 = vmatprep.subr.mxu0 %v573
        %594 = vmatpush1.msra.mxu0 %v572
        %595 = vmatprep.subr.mxu0 %v575
        %596 = vmatpush1.msra.mxu0 %v574
        %597 = vmatprep.subr.mxu0 %v587
        %598 = vmatpush1.msra.mxu0 %v584
        %599 = vmatprep.subr.mxu0 0.0
        %600 = vmatpush1.msra.mxu0 0.0
        %601 = vmatprep.subr.mxu0 0.0
        %602 = vmatpush1.msra.mxu0 0.0
        %603 = vmatprep.subr.mxu0 0.0
        %604 = vmatpush1.msra.mxu0 0.0
        %605 = vmatprep.subr.mxu0 0.0
        %606 = vmatpush1.msra.mxu0 0.0
        %607 = vmatprep.subr.mxu0 0.0
        %608 = vmatpush1.msra.mxu0 0.0
        %609 = vmatprep.subr.mxu0 0.0
        %610 = vmatpush1.msra.mxu0 0.0
        %611 = vmatprep.subr.mxu0 0.0
        %612 = vmatpush1.msra.mxu0 0.0
        %613 = vmatprep.subr.mxu0 0.0
        %614 = vmatpush1.msra.mxu0 0.0
        %615 = vmatprep.subr.mxu0 0.0
        %616 = vmatpush1.msra.mxu0 0.0
        %617 = vmatprep.subr.mxu0 0.0
        %618 = vmatpush1.msra.mxu0 0.0
        %619 = vmatprep.subr.mxu0 0.0
        %620 = vmatpush1.msra.mxu0 0.0
        %621 = vmatprep.subr.mxu0 0.0
        %622 = vmatpush1.msra.mxu0 0.0
        %623 = vmatprep.subr.mxu0 0.0
        %624 = vmatpush1.msra.mxu0 0.0
        %625 = vmatprep.subr.mxu0 0.0
        %626 = vmatpush1.msra.mxu0 0.0
        %627 = vmatprep.subr.mxu0 0.0
        %628 = vmatpush1.msra.mxu0 0.0
        %629 = vmatprep.subr.mxu0 0.0
        %630 = vmatpush1.msra.mxu0 0.0
        %631 = vmatprep.subr.mxu0 0.0
        %632 = vmatpush1.msra.mxu0 0.0
        %633 = vmatprep.subr.mxu0 0.0
        %634 = vmatpush1.msra.mxu0 0.0
        %635 = vmatprep.subr.mxu0 0.0
        %636 = vmatpush1.msra.mxu0 0.0
        %637 = vmatprep.subr.mxu0 0.0
        %638 = vmatpush1.msra.mxu0 0.0
        %639 = vmatprep.subr.mxu0 0.0
        %640 = vmatpush1.msra.mxu0 0.0
        %641 = vmatprep.subr.mxu0 0.0
        %642 = vmatpush1.msra.mxu0 0.0
        %643 = vmatprep.subr.mxu0 0.0
        %644 = vmatpush1.msra.mxu0 0.0
        %645 = vmatprep.subr.mxu0 0.0
        %646 = vmatpush1.msra.mxu0 0.0
        %647 = vmatprep.subr.mxu0 0.0
        %648 = vmatpush1.msra.mxu0 0.0
        %649 = vmatprep.subr.mxu0 0.0
        %650 = vmatpush1.msra.mxu0 0.0
        %651 = vmatprep.subr.mxu0 0.0
        %652 = vmatpush1.msra.mxu0 0.0
        %653 = vmatprep.mubr.f32.mxu0 0.0
        %654 = vmatmul.mubr.f32.gmra.mrb[0].mxu0 %v580
        %v655 = vpop.f32.mrb[0].mxu0
        %v656 = vadd.f32 0.0, %v655
        %v657 = vpop.f32.mrb[0].mxu0
        %v658 = vadd.f32 0.0, %v657
        %659 = vdwg.mxu0
        %v660 = vadd.f32 %v656, %v658
        %661 = vadd.xlane.f32.xlu0 %v660
        %v662 = vpop.xlane.xlu0 %661
        %v663 = vrot.slane %v662, 4
        %v664 = vadd.f32 %v662, %v663
        %v665 = vrot.slane %v664, 2
        %v666 = vadd.f32 %v664, %v665
        %v667 = vrot.slane %v666, 1
        %v668 = vadd.f32 %v666, %v667
        %s669 = vtos %v668
        %v670 = vrcp.pop 2048.0
        %s671 = vtos %v670
        %s672 = smul.f32 %s669, %s671
        %v673 = vmul.f32 %v656, %v656
        %v674 = vmul.f32 %v658, %v658
        %v675 = vadd.f32 %v673, %v674
        %676 = vadd.xlane.f32.xlu0 %v675
        %v677 = vpop.xlane.xlu0 %676
        %v678 = vrot.slane %v677, 4
        %v679 = vadd.f32 %v677, %v678
        %v680 = vrot.slane %v679, 2
        %v681 = vadd.f32 %v679, %v680
        %v682 = vrot.slane %v681, 1
        %v683 = vadd.f32 %v681, %v682
        %s684 = vtos %v683
        %v685 = vrcp.pop 2048.0
        %s686 = vtos %v685
        %s687 = smul.f32 %s684, %s686
        %s688 = smul.f32 %s672, %s672
        %s689 = ssub.f32 %s687, %s688
        %v690 = vstv %s672
        %v691 = vsub.f32 %v656, %v690
        %v692 = vsub.f32 %v658, %v690
        %s693 = sadd.f32 %s689, 1e-05
        %v694 = vstv %s693
        %v695 = vrsqrt.pop %v694
        %s696 = vtos %v695
        %v697 = vstv %s696
        %v698 = vmul.f32 %v691, %v697
        %v699 = vmul.f32 %v692, %v697
        %v700 = vld [vmem:[%s2] sm:$0xff]
        %702 = vset.pattern.permute.xlu0 0
        %703 = vperm.xlu0 %702, %v700
        %v704 = vpop.permute.xlu0 %703
        %v706 = vmul.f32 %v698, %v704
        %v707 = vmul.f32 %v699, %v704
        %v708 = vld [vmem:[%s3] sm:$0xff]
        %710 = vset.pattern.permute.xlu0 0
        %711 = vperm.xlu0 %710, %v708
        %v712 = vpop.permute.xlu0 %711
        %v714 = vadd.f32 %v706, %v712
        %v715 = vadd.f32 %v707, %v712
        %v716 = vmul.f32 %v714, 0.5
        %v717 = vmul.f32 %v715, 0.5
        %v718 = vmul.f32 %v714, 0.70710677
        %v719 = vmul.f32 %v715, 0.70710677
        %v720 = verf.f32.pop %v718
        %v721 = verf.f32.pop %v719
        %v722 = vadd.f32 %v720, 1.0
        %v723 = vadd.f32 %v721, 1.0
        %v724 = vmul.f32 %v716, %v722
        %v725 = vmul.f32 %v717, %v723
        %vm726 = vcmask 138240
        %727 = vst.msk [vmem:[#allocation3] sm:$0xff] %vm726, 0.0
        %vm728 = vcmask 277640
        %729 = vst.msk [vmem:[#allocation3 + $0x10] sm:$0xff] %vm728, 0.0
        %732 = vrot.lane.b32.xlu0 %v724, 17
        %v733 = vpop.permute.xlu0 %732
        %734 = vrot.lane.b32.xlu0 %v725, 17
        %v735 = vpop.permute.xlu0 %734
        %v736 = vsel %vm726, %v733, %v735
        %vm740 = vcmask 1047688
        %741 = vst.msk [vmem:[#allocation3] sm:$0xff] %vm740, %v733
        %742 = vst [vmem:[#allocation3 + $0x8] sm:$0xff] %v736
        %743 = vst.msk [vmem:[#allocation3 + $0x10] sm:$0xff] %vm726, %v735
        %v744 = vld [vmem:[#allocation3] sm:$0xff]
        %v745 = vld [vmem:[#allocation3 + $0x8] sm:$0xff]
        %v748 = vmul.f32 %v744, %v351
        %v749 = vmul.f32 %v745, %v355
        %750 = vst [vmem:[#allocation4] sm:$0xff] %v748
        %751 = vst [vmem:[#allocation4 + $0x8] sm:$0xff] %v749
        %v752 = vld [vmem:[#allocation3] sm:$0xff]
        %v753 = vld [vmem:[#allocation3 + $0x8] sm:$0xff]
        %v754 = vld [vmem:[#allocation3 + $0x10] sm:$0xff]
        %758 = vrot.lane.b32.xlu0 %v752, 127
        %v759 = vpop.permute.xlu0 %758
        %760 = vrot.lane.b32.xlu0 %v753, 127
        %v761 = vpop.permute.xlu0 %760
        %762 = vrot.lane.b32.xlu0 %v754, 127
        %v763 = vpop.permute.xlu0 %762
        %v764 = vsel %vm376, %v759, %v761
        %v765 = vsel %vm376, %v761, %v763
        %768 = vst [vmem:[#allocation4 + $0x10] sm:$0xff] %v764
        %769 = vst [vmem:[#allocation4 + $0x18] sm:$0xff] %v765
        %v770 = vld [vmem:[#allocation3] sm:$0xff]
        %v771 = vld [vmem:[#allocation3 + $0x8] sm:$0xff]
        %v772 = vld [vmem:[#allocation3 + $0x10] sm:$0xff]
        %773 = vrot.lane.b32.xlu0 %v389, 2
        %v774 = vpop.permute.xlu0 %773
        %775 = vrot.lane.b32.xlu0 %v393, 2
        %v776 = vpop.permute.xlu0 %775
        %v777 = vsel %vm398, %v774, %v776
        %v781 = vmul.f32 %v770, %v774
        %v782 = vmul.f32 %v771, %v777
        %v783 = vmul.f32 %v772, %v776
        %787 = vrot.lane.b32.xlu0 %v781, 126
        %v788 = vpop.permute.xlu0 %787
        %789 = vrot.lane.b32.xlu0 %v782, 126
        %v790 = vpop.permute.xlu0 %789
        %791 = vrot.lane.b32.xlu0 %v783, 126
        %v792 = vpop.permute.xlu0 %791
        %v793 = vsel %vm413, %v788, %v790
        %v794 = vsel %vm413, %v790, %v792
        %797 = vst [vmem:[#allocation4 + $0x20] sm:$0xff] %v793
        %798 = vst [vmem:[#allocation4 + $0x28] sm:$0xff] %v794
        %v799 = vld [vmem:[#allocation3] sm:$0xff]
        %v800 = vld [vmem:[#allocation3 + $0x8] sm:$0xff]
        %v801 = vld [vmem:[#allocation3 + $0x10] sm:$0xff]
        %802 = vrot.lane.b32.xlu0 %v351, 16
        %v803 = vpop.permute.xlu0 %802
        %804 = vrot.lane.b32.xlu0 %v355, 16
        %v805 = vpop.permute.xlu0 %804
        %v806 = vsel %vm425, %v803, %v805
        %v810 = vmul.f32 %v799, %v803
        %v811 = vmul.f32 %v800, %v806
        %v812 = vmul.f32 %v801, %v805
        %816 = vrot.lane.b32.xlu0 %v810, 112
        %v817 = vpop.permute.xlu0 %816
        %818 = vrot.lane.b32.xlu0 %v811, 112
        %v819 = vpop.permute.xlu0 %818
        %820 = vrot.lane.b32.xlu0 %v812, 112
        %v821 = vpop.permute.xlu0 %820
        %v822 = vsel %vm441, %v817, %v819
        %v823 = vsel %vm441, %v819, %v821
        %826 = vst [vmem:[#allocation4 + $0x30] sm:$0xff] %v822
        %827 = vst [vmem:[#allocation4 + $0x38] sm:$0xff] %v823
        %828 = vst [vmem:[#allocation4 + $0x40] sm:$0xff] %v724
        %829 = vst [vmem:[#allocation4 + $0x48] sm:$0xff] %v725
        %v830 = vld [vmem:[#allocation3] sm:$0xff]
        %v831 = vld [vmem:[#allocation3 + $0x8] sm:$0xff]
        %v832 = vld [vmem:[#allocation3 + $0x10] sm:$0xff]
        %833 = vrot.lane.b32.xlu0 %v389, 18
        %v834 = vpop.permute.xlu0 %833
        %835 = vrot.lane.b32.xlu0 %v393, 18
        %v836 = vpop.permute.xlu0 %835
        %v837 = vsel %vm471, %v834, %v836
        %v841 = vmul.f32 %v830, %v834
        %v842 = vmul.f32 %v831, %v837
        %v843 = vmul.f32 %v832, %v836
        %847 = vrot.lane.b32.xlu0 %v841, 110
        %v848 = vpop.permute.xlu0 %847
        %849 = vrot.lane.b32.xlu0 %v842, 110
        %v850 = vpop.permute.xlu0 %849
        %851 = vrot.lane.b32.xlu0 %v843, 110
        %v852 = vpop.permute.xlu0 %851
        %v853 = vsel %vm487, %v848, %v850
        %v854 = vsel %vm487, %v850, %v852
        %857 = vst [vmem:[#allocation4 + $0x50] sm:$0xff] %v853
        %858 = vst [vmem:[#allocation4 + $0x58] sm:$0xff] %v854
        %v859 = vld [vmem:[#allocation3] sm:$0xff]
        %v860 = vld [vmem:[#allocation3 + $0x8] sm:$0xff]
        %v861 = vld [vmem:[#allocation3 + $0x10] sm:$0xff]
        %862 = vrot.lane.b32.xlu0 %v351, 32
        %v863 = vpop.permute.xlu0 %862
        %864 = vrot.lane.b32.xlu0 %v355, 32
        %v865 = vpop.permute.xlu0 %864
        %v866 = vsel %vm499, %v863, %v865
        %v870 = vmul.f32 %v859, %v863
        %v871 = vmul.f32 %v860, %v866
        %v872 = vmul.f32 %v861, %v865
        %876 = vrot.lane.b32.xlu0 %v870, 96
        %v877 = vpop.permute.xlu0 %876
        %878 = vrot.lane.b32.xlu0 %v871, 96
        %v879 = vpop.permute.xlu0 %878
        %880 = vrot.lane.b32.xlu0 %v872, 96
        %v881 = vpop.permute.xlu0 %880
        %v882 = vsel %vm514, %v877, %v879
        %v883 = vsel %vm514, %v879, %v881
        %886 = vst [vmem:[#allocation4 + $0x60] sm:$0xff] %v882
        %887 = vst [vmem:[#allocation4 + $0x68] sm:$0xff] %v883
        %v888 = vld [vmem:[#allocation3] sm:$0xff]
        %v889 = vld [vmem:[#allocation3 + $0x8] sm:$0xff]
        %v890 = vld [vmem:[#allocation3 + $0x10] sm:$0xff]
        %894 = vrot.lane.b32.xlu0 %v888, 95
        %v895 = vpop.permute.xlu0 %894
        %896 = vrot.lane.b32.xlu0 %v889, 95
        %v897 = vpop.permute.xlu0 %896
        %898 = vrot.lane.b32.xlu0 %v890, 95
        %v899 = vpop.permute.xlu0 %898
        %v900 = vsel %vm533, %v895, %v897
        %v901 = vsel %vm533, %v897, %v899
        %904 = vst [vmem:[#allocation4 + $0x70] sm:$0xff] %v900
        %905 = vst [vmem:[#allocation4 + $0x78] sm:$0xff] %v901
        %v906 = vld [vmem:[#allocation3] sm:$0xff]
        %v907 = vld [vmem:[#allocation3 + $0x8] sm:$0xff]
        %v908 = vld [vmem:[#allocation3 + $0x10] sm:$0xff]
        %909 = vrot.lane.b32.xlu0 %v389, 34
        %v910 = vpop.permute.xlu0 %909
        %911 = vrot.lane.b32.xlu0 %v393, 34
        %v912 = vpop.permute.xlu0 %911
        %v913 = vsel %vm545, %v910, %v912
        %v917 = vmul.f32 %v906, %v910
        %v918 = vmul.f32 %v907, %v913
        %v919 = vmul.f32 %v908, %v912
        %923 = vrot.lane.b32.xlu0 %v917, 94
        %v924 = vpop.permute.xlu0 %923
        %925 = vrot.lane.b32.xlu0 %v918, 94
        %v926 = vpop.permute.xlu0 %925
        %927 = vrot.lane.b32.xlu0 %v919, 94
        %v928 = vpop.permute.xlu0 %927
        %v929 = vsel %vm560, %v924, %v926
        %v930 = vsel %vm560, %v926, %v928
        %933 = vst [vmem:[#allocation4 + $0x80] sm:$0xff] %v929
        %934 = vst [vmem:[#allocation4 + $0x88] sm:$0xff] %v930
        %v935 = vld [vmem:[%s4] sm:$0xf]
        %v936 = vld [vmem:[#allocation4] sm:$0xff]
        %v937 = vld [vmem:[#allocation4 + $0x8] sm:$0xff]
        %v938 = vld [vmem:[#allocation4 + $0x10] sm:$0xff]
        %v939 = vld [vmem:[#allocation4 + $0x18] sm:$0xff]
        %v940 = vld [vmem:[#allocation4 + $0x20] sm:$0xff]
        %v941 = vld [vmem:[#allocation4 + $0x28] sm:$0xff]
        %v942 = vld [vmem:[#allocation4 + $0x30] sm:$0xff]
        %v943 = vld [vmem:[#allocation4 + $0x38] sm:$0xff]
        %v944 = vld [vmem:[#allocation4 + $0x40] sm:$0xff]
        %v945 = vld [vmem:[#allocation4 + $0x48] sm:$0xff]
        %v946 = vld [vmem:[#allocation4 + $0x50] sm:$0xff]
        %v947 = vld [vmem:[#allocation4 + $0x58] sm:$0xff]
        %v948 = vld [vmem:[#allocation4 + $0x60] sm:$0xff]
        %v949 = vld [vmem:[#allocation4 + $0x68] sm:$0xff]
        %v950 = vld [vmem:[#allocation4 + $0x70] sm:$0xff]
        %v951 = vld [vmem:[#allocation4 + $0x78] sm:$0xff]
        %v952 = vld [vmem:[#allocation4 + $0x80] sm:$0xff]
        %v953 = vld [vmem:[#allocation4 + $0x88] sm:$0xff]
        %vm954 = vcmask 588800
        %v956 = vsel %vm954, %v935, 0
        %958 = vmatprep.subr.mxu0 %v937
        %959 = vmatpush1.msra.mxu0 %v936
        %960 = vmatprep.subr.mxu0 %v939
        %961 = vmatpush1.msra.mxu0 %v938
        %962 = vmatprep.subr.mxu0 %v941
        %963 = vmatpush1.msra.mxu0 %v940
        %964 = vmatprep.subr.mxu0 %v943
        %965 = vmatpush1.msra.mxu0 %v942
        %966 = vmatprep.subr.mxu0 %v945
        %967 = vmatpush1.msra.mxu0 %v944
        %968 = vmatprep.subr.mxu0 %v947
        %969 = vmatpush1.msra.mxu0 %v946
        %970 = vmatprep.subr.mxu0 %v949
        %971 = vmatpush1.msra.mxu0 %v948
        %972 = vmatprep.subr.mxu0 %v951
        %973 = vmatpush1.msra.mxu0 %v950
        %974 = vmatprep.subr.mxu0 %v953
        %975 = vmatpush1.msra.mxu0 %v952
        %976 = vmatprep.subr.mxu0 0.0
        %977 = vmatpush1.msra.mxu0 0.0
        %978 = vmatprep.subr.mxu0 0.0
        %979 = vmatpush1.msra.mxu0 0.0
        %980 = vmatprep.subr.mxu0 0.0
        %981 = vmatpush1.msra.mxu0 0.0
        %982 = vmatprep.subr.mxu0 0.0
        %983 = vmatpush1.msra.mxu0 0.0
        %984 = vmatprep.subr.mxu0 0.0
        %985 = vmatpush1.msra.mxu0 0.0
        %986 = vmatprep.subr.mxu0 0.0
        %987 = vmatpush1.msra.mxu0 0.0
        %988 = vmatprep.subr.mxu0 0.0
        %989 = vmatpush1.msra.mxu0 0.0
        %990 = vmatprep.subr.mxu0 0.0
        %991 = vmatpush1.msra.mxu0 0.0
        %992 = vmatprep.subr.mxu0 0.0
        %993 = vmatpush1.msra.mxu0 0.0
        %994 = vmatprep.subr.mxu0 0.0
        %995 = vmatpush1.msra.mxu0 0.0
        %996 = vmatprep.subr.mxu0 0.0
        %997 = vmatpush1.msra.mxu0 0.0
        %998 = vmatprep.subr.mxu0 0.0
        %999 = vmatpush1.msra.mxu0 0.0
        %1000 = vmatprep.subr.mxu0 0.0
        %1001 = vmatpush1.msra.mxu0 0.0
        %1002 = vmatprep.subr.mxu0 0.0
        %1003 = vmatpush1.msra.mxu0 0.0
        %1004 = vmatprep.subr.mxu0 0.0
        %1005 = vmatpush1.msra.mxu0 0.0
        %1006 = vmatprep.subr.mxu0 0.0
        %1007 = vmatpush1.msra.mxu0 0.0
        %1008 = vmatprep.subr.mxu0 0.0
        %1009 = vmatpush1.msra.mxu0 0.0
        %1010 = vmatprep.subr.mxu0 0.0
        %1011 = vmatpush1.msra.mxu0 0.0
        %1012 = vmatprep.subr.mxu0 0.0
        %1013 = vmatpush1.msra.mxu0 0.0
        %1014 = vmatprep.subr.mxu0 0.0
        %1015 = vmatpush1.msra.mxu0 0.0
        %1016 = vmatprep.subr.mxu0 0.0
        %1017 = vmatpush1.msra.mxu0 0.0
        %1018 = vmatprep.subr.mxu0 0.0
        %1019 = vmatpush1.msra.mxu0 0.0
        %1020 = vmatprep.subr.mxu0 0.0
        %1021 = vmatpush1.msra.mxu0 0.0
        %1022 = vmatprep.mubr.f32.mxu0 0.0
        %1023 = vmatmul.mubr.f32.gmra.mrb[0].mxu0 %v956
        %v1024 = vpop.f32.mrb[0].mxu0
        %v1025 = vadd.f32 0.0, %v1024
        %v1026 = vpop.f32.mrb[0].mxu0
        %v1027 = vadd.f32 0.0, %v1026
        %1028 = vdwg.mxu0
        %v1029 = vsel %vm582, %v1025, 0.0
        %v1030 = vsel %vm582, %v1027, 0.0
        %v1031 = vadd.f32 %v1029, %v1030
        %1032 = vadd.xlane.f32.xlu0 %v1031
        %v1033 = vpop.xlane.xlu0 %1032
        %v1034 = vrot.slane %v1033, 4
        %v1035 = vadd.f32 %v1033, %v1034
        %v1036 = vrot.slane %v1035, 2
        %v1037 = vadd.f32 %v1035, %v1036
        %v1038 = vrot.slane %v1037, 1
        %v1039 = vadd.f32 %v1037, %v1038
        %s1040 = vtos %v1039
        %v1041 = vrcp.pop 1024.0
        %s1042 = vtos %v1041
        %s1043 = smul.f32 %s1040, %s1042
        %v1044 = vmul.f32 %v1025, %v1025
        %v1045 = vmul.f32 %v1027, %v1027
        %v1046 = vsel %vm582, %v1044, 0.0
        %v1047 = vsel %vm582, %v1045, 0.0
        %v1048 = vadd.f32 %v1046, %v1047
        %1049 = vadd.xlane.f32.xlu0 %v1048
        %v1050 = vpop.xlane.xlu0 %1049
        %v1051 = vrot.slane %v1050, 4
        %v1052 = vadd.f32 %v1050, %v1051
        %v1053 = vrot.slane %v1052, 2
        %v1054 = vadd.f32 %v1052, %v1053
        %v1055 = vrot.slane %v1054, 1
        %v1056 = vadd.f32 %v1054, %v1055
        %s1057 = vtos %v1056
        %v1058 = vrcp.pop 1024.0
        %s1059 = vtos %v1058
        %s1060 = smul.f32 %s1057, %s1059
        %s1061 = smul.f32 %s1043, %s1043
        %s1062 = ssub.f32 %s1060, %s1061
        %v1063 = vstv %s1043
        %v1064 = vsub.f32 %v1025, %v1063
        %v1065 = vsub.f32 %v1027, %v1063
        %s1066 = sadd.f32 %s1062, 1e-05
        %v1067 = vstv %s1066
        %v1068 = vrsqrt.pop %v1067
        %s1069 = vtos %v1068
        %v1070 = vstv %s1069
        %v1071 = vmul.f32 %v1064, %v1070
        %v1072 = vmul.f32 %v1065, %v1070
        %v1073 = vld [vmem:[%s5] sm:$0xf]
        %1075 = vset.pattern.permute.xlu0 0
        %1076 = vperm.xlu0 %1075, %v1073
        %v1077 = vpop.permute.xlu0 %1076
        %v1079 = vmul.f32 %v1071, %v1077
        %v1080 = vmul.f32 %v1072, %v1077
        %v1081 = vld [vmem:[%s6] sm:$0xf]
        %1083 = vset.pattern.permute.xlu0 0
        %1084 = vperm.xlu0 %1083, %v1081
        %v1085 = vpop.permute.xlu0 %1084
        %v1087 = vadd.f32 %v1079, %v1085
        %v1088 = vadd.f32 %v1080, %v1085
        %v1089 = vadd.f32 %v1087, %v460
        %v1090 = vadd.f32 %v1088, %v461
        %v1091 = vmul.f32 %v1089, 0.5
        %v1092 = vmul.f32 %v1090, 0.5
        %v1093 = vmul.f32 %v1089, 0.70710677
        %v1094 = vmul.f32 %v1090, 0.70710677
        %v1095 = verf.f32.pop %v1093
        %v1096 = verf.f32.pop %v1094
        %v1097 = vadd.f32 %v1095, 1.0
        %v1098 = vadd.f32 %v1096, 1.0
        %v1099 = vmul.f32 %v1091, %v1097
        %v1100 = vmul.f32 %v1092, %v1098
        %v1103 = vcombine.low %v1099, %v1100
        %1105 = vst [vmem:[%s338] sm:$0xff] %v1103
        %s1106 = sand.u32 %s226, 1
        %s1107 = scalar_lea.sflag [#allocation7], %s1106
        %s1108 = sand.u32 %s226, 1
        %s1109 = smul.addr %s1108, 8
        %s1110 = scalar_lea.vmem [#allocation8], %s1109
        // Predicated region
        $region61: #{tpu_custom_call.1} parent=55 // pred_check
          %p1111 = pneg %p236
        $region62: #{tpu_custom_call.1} parent=55 // pred_check_branch
          %1113 = sbr.rel (%p1111) target = $region64
        $region63: #{tpu_custom_call.1} parent=55 // pred_region
          %s1115 = ssub.s32 128, 128
          %1116 = vsyncadd %s1107, %s1115
          %s1117 = smul.addr %s24, 2
          %s1118 = smul.addr %s1117, 64
          %s1119 = scalar_lea.hbm %s9, %s1118
          %s1121 = sshll.u32 %s1110, 4
          %s1122 = int_to_ptr.vmem [resolvable:$true] %s1121
          %1124 = dma.vmem_to_hbm [thread:$0]  %s1122, 128, %s1119, %s1107
        $region64: #{tpu_custom_call.1} parent=55 // pred_fallthru
          _
      $region56: #{tpu_custom_call.1} parent=5 // pred_fallthru
        _
      %p1125 = scmp.le.s32.totalorder 2, %s19
      // Predicated region
      $region65: #{tpu_custom_call.1} parent=5 // pred_check
        %p1126 = pneg %p1125
      $region66: #{tpu_custom_call.1} parent=5 // pred_check_branch
        %1128 = sbr.rel (%p1126) target = $region68
      $region67: #{tpu_custom_call.1} parent=5 // pred_region
        %s1129 = ssub.s32 %s19, 2
        // Predicated region
        $region69: #{tpu_custom_call.1} parent=67 // pred_check
          %p1130 = pneg %p242
        $region70: #{tpu_custom_call.1} parent=67 // pred_check_branch
          %1132 = sbr.rel (%p1130) target = $region72
        $region71: #{tpu_custom_call.1} parent=67 // pred_region
          %s1133 = sand.u32 %s227, 1
          %s1134 = scalar_lea.sflag [#allocation7], %s1133
          %s1135 = sand.u32 %s227, 1
          %s1136 = smul.addr %s1135, 8
          %s1137 = scalar_lea.vmem [#allocation8], %s1136
          %1138 = dma.done %s1134, 128
        $region72: #{tpu_custom_call.1} parent=67 // pred_fallthru
          _
      $region68: #{tpu_custom_call.1} parent=5 // pred_fallthru
        _
    $region6: #{tpu_custom_call.1} parent=1 // loop_footer
      %s23 = sadd.s32 1, %s19
    $region7: #{tpu_custom_call.1} parent=1 // loop_footer_branch
      %18 = sbr.rel target = $region3
    $region8: #{tpu_custom_call.1} parent=1 // loop_exit
      _
    %1139 = vsyncpa [#allocation6], 1
    %s1140 = scalar_lea.sflag [#allocation6], 1
    %1141 = vsyncpa %s1140, 1
    %1142 = vsyncpa [#allocation7], 1
    %s1143 = scalar_lea.sflag [#allocation7], 1
    %1144 = vsyncpa %s1143, 1

</llo_original>
